<compile_context>
chip_gen: v6e
topology: v6e:2x2x1
jax: 0.10.0
libtpu: 0.0.40
codegen_flags: <defaults>
</compile_context>

<pallas_src>
import jax
import jax.numpy as jnp
from jax import lax
from jax.experimental import pallas as pl
from jax.experimental.pallas import tpu as pltpu


def _round_up(a, b):
    return (a + b - 1) // b * b


def _make_conv_kernel(K, stride, L_out, unroll_limit=64):
    """Kernel body for one (C_out-tile, batch-lane-tile) block."""

    def kernel(w_ref, x_ref, b_ref, o_ref):
        # w_ref: (K, TC, C_in_pad)     per-tap weight slabs
        # x_ref: (L_pad, C_in_pad, TB) time-major input, batch on lanes
        # b_ref: (TC, 1)               bias column
        # o_ref: (L_out, TC, TB)       time-major output, batch on lanes
        bias = b_ref[...].astype(jnp.float32)                  # (TC, 1)

        def emit(j):
            acc = bias                                          # broadcasts to (TC, TB)
            for k in range(K):
                acc = acc + jnp.dot(
                    w_ref[k], x_ref[stride * j + k],
                    preferred_element_type=jnp.float32)
            o_ref[j] = acc.astype(o_ref.dtype)

        if L_out <= unroll_limit:
            for j in range(L_out):                              # static unroll
                emit(j)
        else:
            def body(j, carry):
                emit(j)
                return carry
            lax.fori_loop(0, L_out, body, 0)

    return kernel


def _pick_tiles(B_pad, C_out_pad, fits, max_tb=2048):
    """Largest (C_out tile, batch-lane tile) fitting the VMEM budget."""
    tc_cands = [t for t in range(16, C_out_pad + 1, 16) if C_out_pad % t == 0]
    tc_cands.sort(reverse=True)                    # prefer full C_out resident
    tb_all = [t for t in range(128, min(B_pad, max_tb) + 1, 128) if B_pad % t == 0]
    for tc in tc_cands:
        ok = [t for t in tb_all if fits(tc, t)]
        if not ok:
            continue
        tb = max(ok)
        if B_pad // tb < 2:                        # keep both v7x TCs busy
            multi = [t for t in ok if B_pad // t >= 2]
            if multi:
                tb = max(multi)
        return tc, tb
    # TODO(synk): pathological shapes may not fit; smallest tile as fallback.
    return (tc_cands[-1] if tc_cands else 16), 128


def downsample1d(x, weight, bias, *, kernel_size=3, stride=2, padding=1,
                 compute_dtype=jnp.float32):
    """Conv1d(dim, dim, kernel_size, stride, padding) forward (NCW).

    x:      (B, C_in, L)       float32
    weight: (C_out, C_in, K)   float32
    bias:   (C_out,)           float32
    compute_dtype: dtype of the MXU input streams (f32 = exact parity,
                   bf16 halves HBM bytes; accumulation is always f32).
    returns (B, C_out, L_out)  float32
    """
    B, C_in, L = x.shape
    C_out, C_in_w, K = weight.shape
    assert C_in == C_in_w and K == kernel_size
    L_out = (L + 2 * padding - kernel_size) // stride + 1
    assert L_out >= 1
    L_pad = L + 2 * padding

    compute_dtype = jnp.dtype(compute_dtype)
    itemsize = compute_dtype.itemsize
    out_dtype = jnp.float32

    # ---- alignment padding (sublanes to 16 so bf16 tiles stay clean; lanes
    #      = batch to 128; no per-tile over-padding) ------------------------
    C_in_pad = _round_up(C_in, 16)
    C_out_pad = _round_up(C_out, 16)
    B_pad = _round_up(B, 128)

    # ---- per-generation VMEM budget ---------------------------------------
    try:
        vmem_cap = int(pltpu.get_tpu_info().vmem_capacity_bytes)
    except Exception:
        vmem_cap = 64 * 1024 * 1024       # v7x per-core floor; safe everywhere
    vmem_limit = min(int(0.8 * vmem_cap), 100 * 1024 * 1024)
    tile_budget = int(0.75 * vmem_limit)  # headroom for compiler scratch

    def footprint(tc, tb):                # double-buffered VMEM bytes
        x_b = L_pad * C_in_pad * tb * itemsize
        w_b = K * tc * C_in_pad * itemsize
        o_b = L_out * tc * tb * 4
        b_b = tc * 4
        return 2 * (x_b + w_b + o_b + b_b)

    TC, TB = _pick_tiles(B_pad, C_out_pad,
                         lambda tc, tb: footprint(tc, tb) <= tile_budget)
    vmem_limit = max(vmem_limit,
                     min(int(1.4 * footprint(TC, TB)), int(0.9 * vmem_cap)))

    # ---- glue (single fused pad + transpose + cast; no im2col) ------------
    x_t = jnp.transpose(x, (2, 1, 0))                         # (L, C_in, B)
    x_t = jnp.pad(x_t, ((padding, padding),
                        (0, C_in_pad - C_in),
                        (0, B_pad - B))).astype(compute_dtype)
    w_t = jnp.transpose(weight, (2, 0, 1))                    # (K, C_out, C_in)
    w_t = jnp.pad(w_t, ((0, 0),
                        (0, C_out_pad - C_out),
                        (0, C_in_pad - C_in))).astype(compute_dtype)
    b2d = jnp.pad(bias, (0, C_out_pad - C_out)).reshape(C_out_pad, 1)
    b2d = b2d.astype(jnp.float32)

    # ---- pallas_call -------------------------------------------------------
    grid = (B_pad // TB, C_out_pad // TC)    # lane tiles outer, C_out inner
    kernel = _make_conv_kernel(K, stride, L_out)
    out = pl.pallas_call(
        kernel,
        out_shape=jax.ShapeDtypeStruct((L_out, C_out_pad, B_pad), out_dtype),
        grid_spec=pltpu.PrefetchScalarGridSpec(
            num_scalar_prefetch=0,
            grid=grid,
            in_specs=[
                pl.BlockSpec((K, TC, C_in_pad), lambda jb, ic: (0, ic, 0)),
                pl.BlockSpec((L_pad, C_in_pad, TB), lambda jb, ic: (0, 0, jb)),
                pl.BlockSpec((TC, 1), lambda jb, ic: (ic, 0)),
            ],
            out_specs=pl.BlockSpec((L_out, TC, TB), lambda jb, ic: (0, ic, jb)),
        ),
        compiler_params=pltpu.CompilerParams(
            dimension_semantics=("parallel", "parallel"),
            vmem_limit_bytes=vmem_limit,
        ),
    )(w_t, x_t, b2d)

    # ---- restore NCW -------------------------------------------------------
    return jnp.transpose(out[:, :C_out, :B], (2, 1, 0))


if __name__ == "__main__":
    key = jax.random.PRNGKey(0)
    kx, kw, kb, k2 = jax.random.split(key, 4)

    def ref_conv(x, w, b, stride, padding):
        dim = w.shape[0]
        return lax.conv_general_dilated(
            x, w, window_strides=(stride,), padding=[(padding, padding)],
            dimension_numbers=("NCH", "OIH", "NCH")) + b.reshape(1, dim, 1)

    # Case 1: module-default shapes, exact f32 streams.
    dim, K, stride, padding = 4, 3, 2, 1
    B, L = 2, 16
    x = jax.random.normal(kx, (B, dim, L), dtype=jnp.float32)
    w = jax.random.normal(kw, (dim, dim, K), dtype=jnp.float32) * 0.1
    b = jax.random.normal(kb, (dim,), dtype=jnp.float32) * 0.1

    y = jax.block_until_ready(
        downsample1d(x, w, b, kernel_size=K, stride=stride, padding=padding))
    y_ref = ref_conv(x, w, b, stride, padding)
    L_out = (L + 2 * padding - K) // stride + 1
    assert y.shape == (B, dim, L_out)
    assert jnp.allclose(y, y_ref, atol=1e-5, rtol=1e-5)

    # Case 2: odd L / non-aligned channel count, exact f32 streams.
    dim2, B2, L2 = 6, 3, 15
    kx2, kw2, kb2 = jax.random.split(k2, 3)
    x2 = jax.random.normal(kx2, (B2, dim2, L2), dtype=jnp.float32)
    w2 = jax.random.normal(kw2, (dim2, dim2, K), dtype=jnp.float32) * 0.1
    b2 = jax.random.normal(kb2, (dim2,), dtype=jnp.float32) * 0.1
    y2 = jax.block_until_ready(downsample1d(x2, w2, b2))
    y2_ref = ref_conv(x2, w2, b2, stride, padding)
    assert y2.shape == (B2, dim2, (L2 + 2 * padding - K) // stride + 1)
    assert jnp.allclose(y2, y2_ref, atol=1e-5, rtol=1e-5)

    # Case 3: bf16 input/weight streams with f32 accumulation (relaxed tol).
    y3 = jax.block_until_ready(downsample1d(x, w, b, compute_dtype=jnp.bfloat16))
    assert y3.shape == (B, dim, L_out)
    assert jnp.allclose(y3, y_ref, atol=5e-2, rtol=5e-2)

    print("KERNEL_OK")
</pallas_src>

<mosaic_0001>
module attributes {stable_mosaic.version = 11 : i64} {
  func.func @kernel(%arg0: i32, %arg1: i32, %arg2: memref<3x16x16xf32, #tpu.memory_space<vmem>>, %arg3: memref<18x16x128xf32, #tpu.memory_space<vmem>>, %arg4: memref<16x1xf32, #tpu.memory_space<vmem>>, %arg5: memref<8x16x128xf32, #tpu.memory_space<vmem>>) attributes {dimension_semantics = [#tpu.dimension_semantics<parallel>, #tpu.dimension_semantics<parallel>], iteration_bounds = array<i64: 1, 1>, scalar_prefetch = 0 : i64, scratch_operands = 0 : i64, tpu.core_type = #tpu.core_type<tc>, window_params = [{transform_indices = @transform_0, window_bounds = array<i64: 3, 16, 16>}, {transform_indices = @transform_1, window_bounds = array<i64: 18, 16, 128>}, {transform_indices = @transform_2, window_bounds = array<i64: 16, 1>}, {transform_indices = @transform_3, window_bounds = array<i64: 8, 16, 128>}]} {
    %c0 = arith.constant 0 : index
    %c0_0 = arith.constant 0 : index
    %0 = vector.load %arg4[%c0, %c0_0] : memref<16x1xf32, #tpu.memory_space<vmem>>, vector<16x1xf32>
    %c0_1 = arith.constant 0 : index
    %c0_2 = arith.constant 0 : index
    %c0_3 = arith.constant 0 : index
    %1 = vector.load %arg2[%c0_1, %c0_2, %c0_3] : memref<3x16x16xf32, #tpu.memory_space<vmem>>, vector<1x16x16xf32>
    %2 = vector.shape_cast %1 : vector<1x16x16xf32> to vector<16x16xf32>
    %c0_4 = arith.constant 0 : index
    %c0_5 = arith.constant 0 : index
    %c0_6 = arith.constant 0 : index
    %3 = vector.load %arg3[%c0_4, %c0_5, %c0_6] : memref<18x16x128xf32, #tpu.memory_space<vmem>>, vector<1x16x128xf32>
    %4 = vector.shape_cast %3 : vector<1x16x128xf32> to vector<16x128xf32>
    %cst = arith.constant dense<0.000000e+00> : vector<16x128xf32>
    %5 = tpu.matmul %2, %4, %cst {dimension_numbers = #tpu.dot_dimension_numbers<[1], [0], [0], [1], [0, 0, 1, 1], [], []>} : vector<16x16xf32>, vector<16x128xf32>, vector<16x128xf32> -> vector<16x128xf32>
    %6 = vector.broadcast %0 : vector<16x1xf32> to vector<16x128xf32>
    %7 = arith.addf %6, %5 : vector<16x128xf32>
    %c1 = arith.constant 1 : index
    %c0_7 = arith.constant 0 : index
    %c0_8 = arith.constant 0 : index
    %8 = vector.load %arg2[%c1, %c0_7, %c0_8] : memref<3x16x16xf32, #tpu.memory_space<vmem>>, vector<1x16x16xf32>
    %9 = vector.shape_cast %8 : vector<1x16x16xf32> to vector<16x16xf32>
    %c1_9 = arith.constant 1 : index
    %c0_10 = arith.constant 0 : index
    %c0_11 = arith.constant 0 : index
    %10 = vector.load %arg3[%c1_9, %c0_10, %c0_11] : memref<18x16x128xf32, #tpu.memory_space<vmem>>, vector<1x16x128xf32>
    %11 = vector.shape_cast %10 : vector<1x16x128xf32> to vector<16x128xf32>
    %cst_12 = arith.constant dense<0.000000e+00> : vector<16x128xf32>
    %12 = tpu.matmul %9, %11, %cst_12 {dimension_numbers = #tpu.dot_dimension_numbers<[1], [0], [0], [1], [0, 0, 1, 1], [], []>} : vector<16x16xf32>, vector<16x128xf32>, vector<16x128xf32> -> vector<16x128xf32>
    %13 = arith.addf %7, %12 : vector<16x128xf32>
    %c2 = arith.constant 2 : index
    %c0_13 = arith.constant 0 : index
    %c0_14 = arith.constant 0 : index
    %14 = vector.load %arg2[%c2, %c0_13, %c0_14] : memref<3x16x16xf32, #tpu.memory_space<vmem>>, vector<1x16x16xf32>
    %15 = vector.shape_cast %14 : vector<1x16x16xf32> to vector<16x16xf32>
    %c2_15 = arith.constant 2 : index
    %c0_16 = arith.constant 0 : index
    %c0_17 = arith.constant 0 : index
    %16 = vector.load %arg3[%c2_15, %c0_16, %c0_17] : memref<18x16x128xf32, #tpu.memory_space<vmem>>, vector<1x16x128xf32>
    %17 = vector.shape_cast %16 : vector<1x16x128xf32> to vector<16x128xf32>
    %cst_18 = arith.constant dense<0.000000e+00> : vector<16x128xf32>
    %18 = tpu.matmul %15, %17, %cst_18 {dimension_numbers = #tpu.dot_dimension_numbers<[1], [0], [0], [1], [0, 0, 1, 1], [], []>} : vector<16x16xf32>, vector<16x128xf32>, vector<16x128xf32> -> vector<16x128xf32>
    %19 = arith.addf %13, %18 : vector<16x128xf32>
    %c0_19 = arith.constant 0 : index
    %c0_20 = arith.constant 0 : index
    %c0_21 = arith.constant 0 : index
    %20 = vector.load %arg5[%c0_19, %c0_20, %c0_21] : memref<8x16x128xf32, #tpu.memory_space<vmem>>, vector<1x16x128xf32>
    %21 = vector.shape_cast %20 : vector<1x16x128xf32> to vector<16x128xf32>
    %22 = vector.shape_cast %19 : vector<16x128xf32> to vector<1x16x128xf32>
    tpu.vector_store %arg5[%c0_19, %c0_20, %c0_21], %22 {strides = array<i32>} : memref<8x16x128xf32, #tpu.memory_space<vmem>>, vector<1x16x128xf32>,
    %c0_22 = arith.constant 0 : index
    %c0_23 = arith.constant 0 : index
    %c0_24 = arith.constant 0 : index
    %23 = vector.load %arg2[%c0_22, %c0_23, %c0_24] : memref<3x16x16xf32, #tpu.memory_space<vmem>>, vector<1x16x16xf32>
    %24 = vector.shape_cast %23 : vector<1x16x16xf32> to vector<16x16xf32>
    %c2_25 = arith.constant 2 : index
    %c0_26 = arith.constant 0 : index
    %c0_27 = arith.constant 0 : index
    %25 = vector.load %arg3[%c2_25, %c0_26, %c0_27] : memref<18x16x128xf32, #tpu.memory_space<vmem>>, vector<1x16x128xf32>
    %26 = vector.shape_cast %25 : vector<1x16x128xf32> to vector<16x128xf32>
    %cst_28 = arith.constant dense<0.000000e+00> : vector<16x128xf32>
    %27 = tpu.matmul %24, %26, %cst_28 {dimension_numbers = #tpu.dot_dimension_numbers<[1], [0], [0], [1], [0, 0, 1, 1], [], []>} : vector<16x16xf32>, vector<16x128xf32>, vector<16x128xf32> -> vector<16x128xf32>
    %28 = vector.broadcast %0 : vector<16x1xf32> to vector<16x128xf32>
    %29 = arith.addf %28, %27 : vector<16x128xf32>
    %c1_29 = arith.constant 1 : index
    %c0_30 = arith.constant 0 : index
    %c0_31 = arith.constant 0 : index
    %30 = vector.load %arg2[%c1_29, %c0_30, %c0_31] : memref<3x16x16xf32, #tpu.memory_space<vmem>>, vector<1x16x16xf32>
    %31 = vector.shape_cast %30 : vector<1x16x16xf32> to vector<16x16xf32>
    %c3 = arith.constant 3 : index
    %c0_32 = arith.constant 0 : index
    %c0_33 = arith.constant 0 : index
    %32 = vector.load %arg3[%c3, %c0_32, %c0_33] : memref<18x16x128xf32, #tpu.memory_space<vmem>>, vector<1x16x128xf32>
    %33 = vector.shape_cast %32 : vector<1x16x128xf32> to vector<16x128xf32>
    %cst_34 = arith.constant dense<0.000000e+00> : vector<16x128xf32>
    %34 = tpu.matmul %31, %33, %cst_34 {dimension_numbers = #tpu.dot_dimension_numbers<[1], [0], [0], [1], [0, 0, 1, 1], [], []>} : vector<16x16xf32>, vector<16x128xf32>, vector<16x128xf32> -> vector<16x128xf32>
    %35 = arith.addf %29, %34 : vector<16x128xf32>
    %c2_35 = arith.constant 2 : index
    %c0_36 = arith.constant 0 : index
    %c0_37 = arith.constant 0 : index
    %36 = vector.load %arg2[%c2_35, %c0_36, %c0_37] : memref<3x16x16xf32, #tpu.memory_space<vmem>>, vector<1x16x16xf32>
    %37 = vector.shape_cast %36 : vector<1x16x16xf32> to vector<16x16xf32>
    %c4 = arith.constant 4 : index
    %c0_38 = arith.constant 0 : index
    %c0_39 = arith.constant 0 : index
    %38 = vector.load %arg3[%c4, %c0_38, %c0_39] : memref<18x16x128xf32, #tpu.memory_space<vmem>>, vector<1x16x128xf32>
    %39 = vector.shape_cast %38 : vector<1x16x128xf32> to vector<16x128xf32>
    %cst_40 = arith.constant dense<0.000000e+00> : vector<16x128xf32>
    %40 = tpu.matmul %37, %39, %cst_40 {dimension_numbers = #tpu.dot_dimension_numbers<[1], [0], [0], [1], [0, 0, 1, 1], [], []>} : vector<16x16xf32>, vector<16x128xf32>, vector<16x128xf32> -> vector<16x128xf32>
    %41 = arith.addf %35, %40 : vector<16x128xf32>
    %c1_41 = arith.constant 1 : index
    %c0_42 = arith.constant 0 : index
    %c0_43 = arith.constant 0 : index
    %42 = vector.load %arg5[%c1_41, %c0_42, %c0_43] : memref<8x16x128xf32, #tpu.memory_space<vmem>>, vector<1x16x128xf32>
    %43 = vector.shape_cast %42 : vector<1x16x128xf32> to vector<16x128xf32>
    %44 = vector.shape_cast %41 : vector<16x128xf32> to vector<1x16x128xf32>
    tpu.vector_store %arg5[%c1_41, %c0_42, %c0_43], %44 {strides = array<i32>} : memref<8x16x128xf32, #tpu.memory_space<vmem>>, vector<1x16x128xf32>,
    %c0_44 = arith.constant 0 : index
    %c0_45 = arith.constant 0 : index
    %c0_46 = arith.constant 0 : index
    %45 = vector.load %arg2[%c0_44, %c0_45, %c0_46] : memref<3x16x16xf32, #tpu.memory_space<vmem>>, vector<1x16x16xf32>
    %46 = vector.shape_cast %45 : vector<1x16x16xf32> to vector<16x16xf32>
    %c4_47 = arith.constant 4 : index
    %c0_48 = arith.constant 0 : index
    %c0_49 = arith.constant 0 : index
    %47 = vector.load %arg3[%c4_47, %c0_48, %c0_49] : memref<18x16x128xf32, #tpu.memory_space<vmem>>, vector<1x16x128xf32>
    %48 = vector.shape_cast %47 : vector<1x16x128xf32> to vector<16x128xf32>
    %cst_50 = arith.constant dense<0.000000e+00> : vector<16x128xf32>
    %49 = tpu.matmul %46, %48, %cst_50 {dimension_numbers = #tpu.dot_dimension_numbers<[1], [0], [0], [1], [0, 0, 1, 1], [], []>} : vector<16x16xf32>, vector<16x128xf32>, vector<16x128xf32> -> vector<16x128xf32>
    %50 = vector.broadcast %0 : vector<16x1xf32> to vector<16x128xf32>
    %51 = arith.addf %50, %49 : vector<16x128xf32>
    %c1_51 = arith.constant 1 : index
    %c0_52 = arith.constant 0 : index
    %c0_53 = arith.constant 0 : index
    %52 = vector.load %arg2[%c1_51, %c0_52, %c0_53] : memref<3x16x16xf32, #tpu.memory_space<vmem>>, vector<1x16x16xf32>
    %53 = vector.shape_cast %52 : vector<1x16x16xf32> to vector<16x16xf32>
    %c5 = arith.constant 5 : index
    %c0_54 = arith.constant 0 : index
    %c0_55 = arith.constant 0 : index
    %54 = vector.load %arg3[%c5, %c0_54, %c0_55] : memref<18x16x128xf32, #tpu.memory_space<vmem>>, vector<1x16x128xf32>
    %55 = vector.shape_cast %54 : vector<1x16x128xf32> to vector<16x128xf32>
    %cst_56 = arith.constant dense<0.000000e+00> : vector<16x128xf32>
    %56 = tpu.matmul %53, %55, %cst_56 {dimension_numbers = #tpu.dot_dimension_numbers<[1], [0], [0], [1], [0, 0, 1, 1], [], []>} : vector<16x16xf32>, vector<16x128xf32>, vector<16x128xf32> -> vector<16x128xf32>
    %57 = arith.addf %51, %56 : vector<16x128xf32>
    %c2_57 = arith.constant 2 : index
    %c0_58 = arith.constant 0 : index
    %c0_59 = arith.constant 0 : index
    %58 = vector.load %arg2[%c2_57, %c0_58, %c0_59] : memref<3x16x16xf32, #tpu.memory_space<vmem>>, vector<1x16x16xf32>
    %59 = vector.shape_cast %58 : vector<1x16x16xf32> to vector<16x16xf32>
    %c6 = arith.constant 6 : index
    %c0_60 = arith.constant 0 : index
    %c0_61 = arith.constant 0 : index
    %60 = vector.load %arg3[%c6, %c0_60, %c0_61] : memref<18x16x128xf32, #tpu.memory_space<vmem>>, vector<1x16x128xf32>
    %61 = vector.shape_cast %60 : vector<1x16x128xf32> to vector<16x128xf32>
    %cst_62 = arith.constant dense<0.000000e+00> : vector<16x128xf32>
    %62 = tpu.matmul %59, %61, %cst_62 {dimension_numbers = #tpu.dot_dimension_numbers<[1], [0], [0], [1], [0, 0, 1, 1], [], []>} : vector<16x16xf32>, vector<16x128xf32>, vector<16x128xf32> -> vector<16x128xf32>
    %63 = arith.addf %57, %62 : vector<16x128xf32>
    %c2_63 = arith.constant 2 : index
    %c0_64 = arith.constant 0 : index
    %c0_65 = arith.constant 0 : index
    %64 = vector.load %arg5[%c2_63, %c0_64, %c0_65] : memref<8x16x128xf32, #tpu.memory_space<vmem>>, vector<1x16x128xf32>
    %65 = vector.shape_cast %64 : vector<1x16x128xf32> to vector<16x128xf32>
    %66 = vector.shape_cast %63 : vector<16x128xf32> to vector<1x16x128xf32>
    tpu.vector_store %arg5[%c2_63, %c0_64, %c0_65], %66 {strides = array<i32>} : memref<8x16x128xf32, #tpu.memory_space<vmem>>, vector<1x16x128xf32>,
    %c0_66 = arith.constant 0 : index
    %c0_67 = arith.constant 0 : index
    %c0_68 = arith.constant 0 : index
    %67 = vector.load %arg2[%c0_66, %c0_67, %c0_68] : memref<3x16x16xf32, #tpu.memory_space<vmem>>, vector<1x16x16xf32>
    %68 = vector.shape_cast %67 : vector<1x16x16xf32> to vector<16x16xf32>
    %c6_69 = arith.constant 6 : index
    %c0_70 = arith.constant 0 : index
    %c0_71 = arith.constant 0 : index
    %69 = vector.load %arg3[%c6_69, %c0_70, %c0_71] : memref<18x16x128xf32, #tpu.memory_space<vmem>>, vector<1x16x128xf32>
    %70 = vector.shape_cast %69 : vector<1x16x128xf32> to vector<16x128xf32>
    %cst_72 = arith.constant dense<0.000000e+00> : vector<16x128xf32>
    %71 = tpu.matmul %68, %70, %cst_72 {dimension_numbers = #tpu.dot_dimension_numbers<[1], [0], [0], [1], [0, 0, 1, 1], [], []>} : vector<16x16xf32>, vector<16x128xf32>, vector<16x128xf32> -> vector<16x128xf32>
    %72 = vector.broadcast %0 : vector<16x1xf32> to vector<16x128xf32>
    %73 = arith.addf %72, %71 : vector<16x128xf32>
    %c1_73 = arith.constant 1 : index
    %c0_74 = arith.constant 0 : index
    %c0_75 = arith.constant 0 : index
    %74 = vector.load %arg2[%c1_73, %c0_74, %c0_75] : memref<3x16x16xf32, #tpu.memory_space<vmem>>, vector<1x16x16xf32>
    %75 = vector.shape_cast %74 : vector<1x16x16xf32> to vector<16x16xf32>
    %c7 = arith.constant 7 : index
    %c0_76 = arith.constant 0 : index
    %c0_77 = arith.constant 0 : index
    %76 = vector.load %arg3[%c7, %c0_76, %c0_77] : memref<18x16x128xf32, #tpu.memory_space<vmem>>, vector<1x16x128xf32>
    %77 = vector.shape_cast %76 : vector<1x16x128xf32> to vector<16x128xf32>
    %cst_78 = arith.constant dense<0.000000e+00> : vector<16x128xf32>
    %78 = tpu.matmul %75, %77, %cst_78 {dimension_numbers = #tpu.dot_dimension_numbers<[1], [0], [0], [1], [0, 0, 1, 1], [], []>} : vector<16x16xf32>, vector<16x128xf32>, vector<16x128xf32> -> vector<16x128xf32>
    %79 = arith.addf %73, %78 : vector<16x128xf32>
    %c2_79 = arith.constant 2 : index
    %c0_80 = arith.constant 0 : index
    %c0_81 = arith.constant 0 : index
    %80 = vector.load %arg2[%c2_79, %c0_80, %c0_81] : memref<3x16x16xf32, #tpu.memory_space<vmem>>, vector<1x16x16xf32>
    %81 = vector.shape_cast %80 : vector<1x16x16xf32> to vector<16x16xf32>
    %c8 = arith.constant 8 : index
    %c0_82 = arith.constant 0 : index
    %c0_83 = arith.constant 0 : index
    %82 = vector.load %arg3[%c8, %c0_82, %c0_83] : memref<18x16x128xf32, #tpu.memory_space<vmem>>, vector<1x16x128xf32>
    %83 = vector.shape_cast %82 : vector<1x16x128xf32> to vector<16x128xf32>
    %cst_84 = arith.constant dense<0.000000e+00> : vector<16x128xf32>
    %84 = tpu.matmul %81, %83, %cst_84 {dimension_numbers = #tpu.dot_dimension_numbers<[1], [0], [0], [1], [0, 0, 1, 1], [], []>} : vector<16x16xf32>, vector<16x128xf32>, vector<16x128xf32> -> vector<16x128xf32>
    %85 = arith.addf %79, %84 : vector<16x128xf32>
    %c3_85 = arith.constant 3 : index
    %c0_86 = arith.constant 0 : index
    %c0_87 = arith.constant 0 : index
    %86 = vector.load %arg5[%c3_85, %c0_86, %c0_87] : memref<8x16x128xf32, #tpu.memory_space<vmem>>, vector<1x16x128xf32>
    %87 = vector.shape_cast %86 : vector<1x16x128xf32> to vector<16x128xf32>
    %88 = vector.shape_cast %85 : vector<16x128xf32> to vector<1x16x128xf32>
    tpu.vector_store %arg5[%c3_85, %c0_86, %c0_87], %88 {strides = array<i32>} : memref<8x16x128xf32, #tpu.memory_space<vmem>>, vector<1x16x128xf32>,
    %c0_88 = arith.constant 0 : index
    %c0_89 = arith.constant 0 : index
    %c0_90 = arith.constant 0 : index
    %89 = vector.load %arg2[%c0_88, %c0_89, %c0_90] : memref<3x16x16xf32, #tpu.memory_space<vmem>>, vector<1x16x16xf32>
    %90 = vector.shape_cast %89 : vector<1x16x16xf32> to vector<16x16xf32>
    %c8_91 = arith.constant 8 : index
    %c0_92 = arith.constant 0 : index
    %c0_93 = arith.constant 0 : index
    %91 = vector.load %arg3[%c8_91, %c0_92, %c0_93] : memref<18x16x128xf32, #tpu.memory_space<vmem>>, vector<1x16x128xf32>
    %92 = vector.shape_cast %91 : vector<1x16x128xf32> to vector<16x128xf32>
    %cst_94 = arith.constant dense<0.000000e+00> : vector<16x128xf32>
    %93 = tpu.matmul %90, %92, %cst_94 {dimension_numbers = #tpu.dot_dimension_numbers<[1], [0], [0], [1], [0, 0, 1, 1], [], []>} : vector<16x16xf32>, vector<16x128xf32>, vector<16x128xf32> -> vector<16x128xf32>
    %94 = vector.broadcast %0 : vector<16x1xf32> to vector<16x128xf32>
    %95 = arith.addf %94, %93 : vector<16x128xf32>
    %c1_95 = arith.constant 1 : index
    %c0_96 = arith.constant 0 : index
    %c0_97 = arith.constant 0 : index
    %96 = vector.load %arg2[%c1_95, %c0_96, %c0_97] : memref<3x16x16xf32, #tpu.memory_space<vmem>>, vector<1x16x16xf32>
    %97 = vector.shape_cast %96 : vector<1x16x16xf32> to vector<16x16xf32>
    %c9 = arith.constant 9 : index
    %c0_98 = arith.constant 0 : index
    %c0_99 = arith.constant 0 : index
    %98 = vector.load %arg3[%c9, %c0_98, %c0_99] : memref<18x16x128xf32, #tpu.memory_space<vmem>>, vector<1x16x128xf32>
    %99 = vector.shape_cast %98 : vector<1x16x128xf32> to vector<16x128xf32>
    %cst_100 = arith.constant dense<0.000000e+00> : vector<16x128xf32>
    %100 = tpu.matmul %97, %99, %cst_100 {dimension_numbers = #tpu.dot_dimension_numbers<[1], [0], [0], [1], [0, 0, 1, 1], [], []>} : vector<16x16xf32>, vector<16x128xf32>, vector<16x128xf32> -> vector<16x128xf32>
    %101 = arith.addf %95, %100 : vector<16x128xf32>
    %c2_101 = arith.constant 2 : index
    %c0_102 = arith.constant 0 : index
    %c0_103 = arith.constant 0 : index
    %102 = vector.load %arg2[%c2_101, %c0_102, %c0_103] : memref<3x16x16xf32, #tpu.memory_space<vmem>>, vector<1x16x16xf32>
    %103 = vector.shape_cast %102 : vector<1x16x16xf32> to vector<16x16xf32>
    %c10 = arith.constant 10 : index
    %c0_104 = arith.constant 0 : index
    %c0_105 = arith.constant 0 : index
    %104 = vector.load %arg3[%c10, %c0_104, %c0_105] : memref<18x16x128xf32, #tpu.memory_space<vmem>>, vector<1x16x128xf32>
    %105 = vector.shape_cast %104 : vector<1x16x128xf32> to vector<16x128xf32>
    %cst_106 = arith.constant dense<0.000000e+00> : vector<16x128xf32>
    %106 = tpu.matmul %103, %105, %cst_106 {dimension_numbers = #tpu.dot_dimension_numbers<[1], [0], [0], [1], [0, 0, 1, 1], [], []>} : vector<16x16xf32>, vector<16x128xf32>, vector<16x128xf32> -> vector<16x128xf32>
    %107 = arith.addf %101, %106 : vector<16x128xf32>
    %c4_107 = arith.constant 4 : index
    %c0_108 = arith.constant 0 : index
    %c0_109 = arith.constant 0 : index
    %108 = vector.load %arg5[%c4_107, %c0_108, %c0_109] : memref<8x16x128xf32, #tpu.memory_space<vmem>>, vector<1x16x128xf32>
    %109 = vector.shape_cast %108 : vector<1x16x128xf32> to vector<16x128xf32>
    %110 = vector.shape_cast %107 : vector<16x128xf32> to vector<1x16x128xf32>
    tpu.vector_store %arg5[%c4_107, %c0_108, %c0_109], %110 {strides = array<i32>} : memref<8x16x128xf32, #tpu.memory_space<vmem>>, vector<1x16x128xf32>,
    %c0_110 = arith.constant 0 : index
    %c0_111 = arith.constant 0 : index
    %c0_112 = arith.constant 0 : index
    %111 = vector.load %arg2[%c0_110, %c0_111, %c0_112] : memref<3x16x16xf32, #tpu.memory_space<vmem>>, vector<1x16x16xf32>
    %112 = vector.shape_cast %111 : vector<1x16x16xf32> to vector<16x16xf32>
    %c10_113 = arith.constant 10 : index
    %c0_114 = arith.constant 0 : index
    %c0_115 = arith.constant 0 : index
    %113 = vector.load %arg3[%c10_113, %c0_114, %c0_115] : memref<18x16x128xf32, #tpu.memory_space<vmem>>, vector<1x16x128xf32>
    %114 = vector.shape_cast %113 : vector<1x16x128xf32> to vector<16x128xf32>
    %cst_116 = arith.constant dense<0.000000e+00> : vector<16x128xf32>
    %115 = tpu.matmul %112, %114, %cst_116 {dimension_numbers = #tpu.dot_dimension_numbers<[1], [0], [0], [1], [0, 0, 1, 1], [], []>} : vector<16x16xf32>, vector<16x128xf32>, vector<16x128xf32> -> vector<16x128xf32>
    %116 = vector.broadcast %0 : vector<16x1xf32> to vector<16x128xf32>
    %117 = arith.addf %116, %115 : vector<16x128xf32>
    %c1_117 = arith.constant 1 : index
    %c0_118 = arith.constant 0 : index
    %c0_119 = arith.constant 0 : index
    %118 = vector.load %arg2[%c1_117, %c0_118, %c0_119] : memref<3x16x16xf32, #tpu.memory_space<vmem>>, vector<1x16x16xf32>
    %119 = vector.shape_cast %118 : vector<1x16x16xf32> to vector<16x16xf32>
    %c11 = arith.constant 11 : index
    %c0_120 = arith.constant 0 : index
    %c0_121 = arith.constant 0 : index
    %120 = vector.load %arg3[%c11, %c0_120, %c0_121] : memref<18x16x128xf32, #tpu.memory_space<vmem>>, vector<1x16x128xf32>
    %121 = vector.shape_cast %120 : vector<1x16x128xf32> to vector<16x128xf32>
    %cst_122 = arith.constant dense<0.000000e+00> : vector<16x128xf32>
    %122 = tpu.matmul %119, %121, %cst_122 {dimension_numbers = #tpu.dot_dimension_numbers<[1], [0], [0], [1], [0, 0, 1, 1], [], []>} : vector<16x16xf32>, vector<16x128xf32>, vector<16x128xf32> -> vector<16x128xf32>
    %123 = arith.addf %117, %122 : vector<16x128xf32>
    %c2_123 = arith.constant 2 : index
    %c0_124 = arith.constant 0 : index
    %c0_125 = arith.constant 0 : index
    %124 = vector.load %arg2[%c2_123, %c0_124, %c0_125] : memref<3x16x16xf32, #tpu.memory_space<vmem>>, vector<1x16x16xf32>
    %125 = vector.shape_cast %124 : vector<1x16x16xf32> to vector<16x16xf32>
    %c12 = arith.constant 12 : index
    %c0_126 = arith.constant 0 : index
    %c0_127 = arith.constant 0 : index
    %126 = vector.load %arg3[%c12, %c0_126, %c0_127] : memref<18x16x128xf32, #tpu.memory_space<vmem>>, vector<1x16x128xf32>
    %127 = vector.shape_cast %126 : vector<1x16x128xf32> to vector<16x128xf32>
    %cst_128 = arith.constant dense<0.000000e+00> : vector<16x128xf32>
    %128 = tpu.matmul %125, %127, %cst_128 {dimension_numbers = #tpu.dot_dimension_numbers<[1], [0], [0], [1], [0, 0, 1, 1], [], []>} : vector<16x16xf32>, vector<16x128xf32>, vector<16x128xf32> -> vector<16x128xf32>
    %129 = arith.addf %123, %128 : vector<16x128xf32>
    %c5_129 = arith.constant 5 : index
    %c0_130 = arith.constant 0 : index
    %c0_131 = arith.constant 0 : index
    %130 = vector.load %arg5[%c5_129, %c0_130, %c0_131] : memref<8x16x128xf32, #tpu.memory_space<vmem>>, vector<1x16x128xf32>
    %131 = vector.shape_cast %130 : vector<1x16x128xf32> to vector<16x128xf32>
    %132 = vector.shape_cast %129 : vector<16x128xf32> to vector<1x16x128xf32>
    tpu.vector_store %arg5[%c5_129, %c0_130, %c0_131], %132 {strides = array<i32>} : memref<8x16x128xf32, #tpu.memory_space<vmem>>, vector<1x16x128xf32>,
    %c0_132 = arith.constant 0 : index
    %c0_133 = arith.constant 0 : index
    %c0_134 = arith.constant 0 : index
    %133 = vector.load %arg2[%c0_132, %c0_133, %c0_134] : memref<3x16x16xf32, #tpu.memory_space<vmem>>, vector<1x16x16xf32>
    %134 = vector.shape_cast %133 : vector<1x16x16xf32> to vector<16x16xf32>
    %c12_135 = arith.constant 12 : index
    %c0_136 = arith.constant 0 : index
    %c0_137 = arith.constant 0 : index
    %135 = vector.load %arg3[%c12_135, %c0_136, %c0_137] : memref<18x16x128xf32, #tpu.memory_space<vmem>>, vector<1x16x128xf32>
    %136 = vector.shape_cast %135 : vector<1x16x128xf32> to vector<16x128xf32>
    %cst_138 = arith.constant dense<0.000000e+00> : vector<16x128xf32>
    %137 = tpu.matmul %134, %136, %cst_138 {dimension_numbers = #tpu.dot_dimension_numbers<[1], [0], [0], [1], [0, 0, 1, 1], [], []>} : vector<16x16xf32>, vector<16x128xf32>, vector<16x128xf32> -> vector<16x128xf32>
    %138 = vector.broadcast %0 : vector<16x1xf32> to vector<16x128xf32>
    %139 = arith.addf %138, %137 : vector<16x128xf32>
    %c1_139 = arith.constant 1 : index
    %c0_140 = arith.constant 0 : index
    %c0_141 = arith.constant 0 : index
    %140 = vector.load %arg2[%c1_139, %c0_140, %c0_141] : memref<3x16x16xf32, #tpu.memory_space<vmem>>, vector<1x16x16xf32>
    %141 = vector.shape_cast %140 : vector<1x16x16xf32> to vector<16x16xf32>
    %c13 = arith.constant 13 : index
    %c0_142 = arith.constant 0 : index
    %c0_143 = arith.constant 0 : index
    %142 = vector.load %arg3[%c13, %c0_142, %c0_143] : memref<18x16x128xf32, #tpu.memory_space<vmem>>, vector<1x16x128xf32>
    %143 = vector.shape_cast %142 : vector<1x16x128xf32> to vector<16x128xf32>
    %cst_144 = arith.constant dense<0.000000e+00> : vector<16x128xf32>
    %144 = tpu.matmul %141, %143, %cst_144 {dimension_numbers = #tpu.dot_dimension_numbers<[1], [0], [0], [1], [0, 0, 1, 1], [], []>} : vector<16x16xf32>, vector<16x128xf32>, vector<16x128xf32> -> vector<16x128xf32>
    %145 = arith.addf %139, %144 : vector<16x128xf32>
    %c2_145 = arith.constant 2 : index
    %c0_146 = arith.constant 0 : index
    %c0_147 = arith.constant 0 : index
    %146 = vector.load %arg2[%c2_145, %c0_146, %c0_147] : memref<3x16x16xf32, #tpu.memory_space<vmem>>, vector<1x16x16xf32>
    %147 = vector.shape_cast %146 : vector<1x16x16xf32> to vector<16x16xf32>
    %c14 = arith.constant 14 : index
    %c0_148 = arith.constant 0 : index
    %c0_149 = arith.constant 0 : index
    %148 = vector.load %arg3[%c14, %c0_148, %c0_149] : memref<18x16x128xf32, #tpu.memory_space<vmem>>, vector<1x16x128xf32>
    %149 = vector.shape_cast %148 : vector<1x16x128xf32> to vector<16x128xf32>
    %cst_150 = arith.constant dense<0.000000e+00> : vector<16x128xf32>
    %150 = tpu.matmul %147, %149, %cst_150 {dimension_numbers = #tpu.dot_dimension_numbers<[1], [0], [0], [1], [0, 0, 1, 1], [], []>} : vector<16x16xf32>, vector<16x128xf32>, vector<16x128xf32> -> vector<16x128xf32>
    %151 = arith.addf %145, %150 : vector<16x128xf32>
    %c6_151 = arith.constant 6 : index
    %c0_152 = arith.constant 0 : index
    %c0_153 = arith.constant 0 : index
    %152 = vector.load %arg5[%c6_151, %c0_152, %c0_153] : memref<8x16x128xf32, #tpu.memory_space<vmem>>, vector<1x16x128xf32>
    %153 = vector.shape_cast %152 : vector<1x16x128xf32> to vector<16x128xf32>
    %154 = vector.shape_cast %151 : vector<16x128xf32> to vector<1x16x128xf32>
    tpu.vector_store %arg5[%c6_151, %c0_152, %c0_153], %154 {strides = array<i32>} : memref<8x16x128xf32, #tpu.memory_space<vmem>>, vector<1x16x128xf32>,
    %c0_154 = arith.constant 0 : index
    %c0_155 = arith.constant 0 : index
    %c0_156 = arith.constant 0 : index
    %155 = vector.load %arg2[%c0_154, %c0_155, %c0_156] : memref<3x16x16xf32, #tpu.memory_space<vmem>>, vector<1x16x16xf32>
    %156 = vector.shape_cast %155 : vector<1x16x16xf32> to vector<16x16xf32>
    %c14_157 = arith.constant 14 : index
    %c0_158 = arith.constant 0 : index
    %c0_159 = arith.constant 0 : index
    %157 = vector.load %arg3[%c14_157, %c0_158, %c0_159] : memref<18x16x128xf32, #tpu.memory_space<vmem>>, vector<1x16x128xf32>
    %158 = vector.shape_cast %157 : vector<1x16x128xf32> to vector<16x128xf32>
    %cst_160 = arith.constant dense<0.000000e+00> : vector<16x128xf32>
    %159 = tpu.matmul %156, %158, %cst_160 {dimension_numbers = #tpu.dot_dimension_numbers<[1], [0], [0], [1], [0, 0, 1, 1], [], []>} : vector<16x16xf32>, vector<16x128xf32>, vector<16x128xf32> -> vector<16x128xf32>
    %160 = vector.broadcast %0 : vector<16x1xf32> to vector<16x128xf32>
    %161 = arith.addf %160, %159 : vector<16x128xf32>
    %c1_161 = arith.constant 1 : index
    %c0_162 = arith.constant 0 : index
    %c0_163 = arith.constant 0 : index
    %162 = vector.load %arg2[%c1_161, %c0_162, %c0_163] : memref<3x16x16xf32, #tpu.memory_space<vmem>>, vector<1x16x16xf32>
    %163 = vector.shape_cast %162 : vector<1x16x16xf32> to vector<16x16xf32>
    %c15 = arith.constant 15 : index
    %c0_164 = arith.constant 0 : index
    %c0_165 = arith.constant 0 : index
    %164 = vector.load %arg3[%c15, %c0_164, %c0_165] : memref<18x16x128xf32, #tpu.memory_space<vmem>>, vector<1x16x128xf32>
    %165 = vector.shape_cast %164 : vector<1x16x128xf32> to vector<16x128xf32>
    %cst_166 = arith.constant dense<0.000000e+00> : vector<16x128xf32>
    %166 = tpu.matmul %163, %165, %cst_166 {dimension_numbers = #tpu.dot_dimension_numbers<[1], [0], [0], [1], [0, 0, 1, 1], [], []>} : vector<16x16xf32>, vector<16x128xf32>, vector<16x128xf32> -> vector<16x128xf32>
    %167 = arith.addf %161, %166 : vector<16x128xf32>
    %c2_167 = arith.constant 2 : index
    %c0_168 = arith.constant 0 : index
    %c0_169 = arith.constant 0 : index
    %168 = vector.load %arg2[%c2_167, %c0_168, %c0_169] : memref<3x16x16xf32, #tpu.memory_space<vmem>>, vector<1x16x16xf32>
    %169 = vector.shape_cast %168 : vector<1x16x16xf32> to vector<16x16xf32>
    %c16 = arith.constant 16 : index
    %c0_170 = arith.constant 0 : index
    %c0_171 = arith.constant 0 : index
    %170 = vector.load %arg3[%c16, %c0_170, %c0_171] : memref<18x16x128xf32, #tpu.memory_space<vmem>>, vector<1x16x128xf32>
    %171 = vector.shape_cast %170 : vector<1x16x128xf32> to vector<16x128xf32>
    %cst_172 = arith.constant dense<0.000000e+00> : vector<16x128xf32>
    %172 = tpu.matmul %169, %171, %cst_172 {dimension_numbers = #tpu.dot_dimension_numbers<[1], [0], [0], [1], [0, 0, 1, 1], [], []>} : vector<16x16xf32>, vector<16x128xf32>, vector<16x128xf32> -> vector<16x128xf32>
    %173 = arith.addf %167, %172 : vector<16x128xf32>
    %c7_173 = arith.constant 7 : index
    %c0_174 = arith.constant 0 : index
    %c0_175 = arith.constant 0 : index
    %174 = vector.load %arg5[%c7_173, %c0_174, %c0_175] : memref<8x16x128xf32, #tpu.memory_space<vmem>>, vector<1x16x128xf32>
    %175 = vector.shape_cast %174 : vector<1x16x128xf32> to vector<16x128xf32>
    %176 = vector.shape_cast %173 : vector<16x128xf32> to vector<1x16x128xf32>
    tpu.vector_store %arg5[%c7_173, %c0_174, %c0_175], %176 {strides = array<i32>} : memref<8x16x128xf32, #tpu.memory_space<vmem>>, vector<1x16x128xf32>,
    return
  }
  func.func @transform_0(%arg0: i32, %arg1: i32) -> (i32, i32, i32) {
    %c0_i32 = arith.constant 0 : i32
    %c0_i32_0 = arith.constant 0 : i32
    %c0_i32_1 = arith.constant 0 : i32
    return %c0_i32, %arg1, %c0_i32_0 : i32, i32, i32
  }
  func.func @transform_1(%arg0: i32, %arg1: i32) -> (i32, i32, i32) {
    %c0_i32 = arith.constant 0 : i32
    %c0_i32_0 = arith.constant 0 : i32
    %c0_i32_1 = arith.constant 0 : i32
    return %c0_i32, %c0_i32_0, %arg0 : i32, i32, i32
  }
  func.func @transform_2(%arg0: i32, %arg1: i32) -> (i32, i32) {
    %c0_i32 = arith.constant 0 : i32
    %c0_i32_0 = arith.constant 0 : i32
    return %arg1, %c0_i32 : i32, i32
  }
  func.func @transform_3(%arg0: i32, %arg1: i32) -> (i32, i32, i32) {
    %c0_i32 = arith.constant 0 : i32
    %c0_i32_0 = arith.constant 0 : i32
    return %c0_i32, %arg1, %arg0 : i32, i32, i32
  }
}

</mosaic_0001>

<llo_original>
// kernel: tpu_custom_call.1
$region0: #{tpu_custom_call.1}
  #allocation0 [shape = 'u32[]', space=smem, size = 0x4, offset = 0x4, fixed_abs, tag = 'smem constant byte address 0x4 - core index']
  #allocation1 [shape = 'u32[144,128]{1,0:T(1,128)}', space=vmem, size = 0x12000, scoped, tag = 'internal scratch']
  %s0 = inlined_call_operand.hbm [shape: f32[3,16,16], index: 0, kind: input, shape index: {}]
  %s1 = inlined_call_operand.hbm [shape: f32[18,16,128], index: 1, kind: input, shape index: {}]
  %s2 = inlined_call_operand.vmem [shape: f32[16,1], index: 2, kind: input, shape index: {}]
  %s3 = inlined_call_operand.hbm [shape: f32[8,16,128], index: 3, kind: output, shape index: {}]
  %s4 = sld [smem:[#allocation0]]
  $region30: #{tpu_custom_call.1} parent=0
    _
  %s6 = ssub.s32 1, %s4
  %s7 = scalar_select 0, %s6, %s4
  $region1: #{tpu_custom_call.1} parent=0
    #allocation2 [shape = 'u8[24576]{0}', space=vmem, size = 0x6000, scoped, tag = 'input window, operand 0, single buffered']
    #allocation3 [shape = 's32[1]{0}', space=sflag, size = 0x4, scoped, tag = 'scoped memory for tpu_custom_call.1']
    #allocation4 [shape = 's32[1]{0}', space=sflag, size = 0x4, scoped, tag = 'scoped memory for tpu_custom_call.1']
    #allocation5 [shape = 'u8[147456]{0}', space=vmem, size = 0x24000, scoped, tag = 'input window, operand 1, single buffered']
    #allocation6 [shape = 's32[1]{0}', space=sflag, size = 0x4, scoped, tag = 'scoped memory for tpu_custom_call.1']
    #allocation7 [shape = 'u8[65536]{0}', space=vmem, size = 0x10000, scoped, tag = 'output window, operand 0, single buffered']
    %8 = vsyncpa [#allocation3], 0
    %9 = vsyncpa [#allocation6], 0
    %10 = vsyncpa [#allocation4], 0
    // Predicated region
    $region2: #{tpu_custom_call.1} parent=1 // pred_check
      _
    $region3: #{tpu_custom_call.1} parent=1 // pred_check_branch
      %12 = sbr.rel (0) target = $region5
    $region4: #{tpu_custom_call.1} parent=1 // pred_region
      %s14 = ssub.s32 768, 768
      %15 = vsyncadd [#allocation3], %s14
      %s16 = sshll.u32 [#allocation2], 4
      %s17 = int_to_ptr.vmem [resolvable:$true] %s16
      %22 = dma.hbm_to_vmem [thread:$0]  %s0, 768, %s17, [#allocation3], 128, 128, 8
    $region5: #{tpu_custom_call.1} parent=1 // pred_fallthru
      _
    // Predicated region
    $region6: #{tpu_custom_call.1} parent=1 // pred_check
      _
    $region7: #{tpu_custom_call.1} parent=1 // pred_check_branch
      %24 = sbr.rel (0) target = $region9
    $region8: #{tpu_custom_call.1} parent=1 // pred_region
      %s26 = ssub.s32 4608, 4608
      %27 = vsyncadd [#allocation6], %s26
      %s28 = sshll.u32 [#allocation5], 4
      %s29 = int_to_ptr.vmem [resolvable:$true] %s28
      %34 = dma.hbm_to_vmem [thread:$0]  %s1, 4608, %s29, [#allocation6], 128, 128, 8
    $region9: #{tpu_custom_call.1} parent=1 // pred_fallthru
      _
    // Predicated region
    $region10: #{tpu_custom_call.1} parent=1 // pred_check
      _
    $region11: #{tpu_custom_call.1} parent=1 // pred_check_branch
      %36 = sbr.rel (0) target = $region13
    $region12: #{tpu_custom_call.1} parent=1 // pred_region
      _
    $region13: #{tpu_custom_call.1} parent=1 // pred_fallthru
      _
    // Predicated region
    $region14: #{tpu_custom_call.1} parent=1 // pred_check
      _
    $region15: #{tpu_custom_call.1} parent=1 // pred_check_branch
      %38 = sbr.rel (0) target = $region17
    $region16: #{tpu_custom_call.1} parent=1 // pred_region
      %39 = dma.done [#allocation3], 768
    $region17: #{tpu_custom_call.1} parent=1 // pred_fallthru
      _
    // Predicated region
    $region18: #{tpu_custom_call.1} parent=1 // pred_check
      _
    $region19: #{tpu_custom_call.1} parent=1 // pred_check_branch
      %41 = sbr.rel (0) target = $region21
    $region20: #{tpu_custom_call.1} parent=1 // pred_region
      %42 = dma.done [#allocation6], 4608
    $region21: #{tpu_custom_call.1} parent=1 // pred_fallthru
      _
    %v43 = vld [vmem:[%s2] sm:$0xff]
    %v44 = vld [vmem:[%s2 + $0x8] sm:$0xff]
    %v45 = vld [vmem:[#allocation2] sm:$0xff]
    %v46 = vld [vmem:[#allocation2 + $0x8] sm:$0xff]
    %v47 = vld [vmem:[#allocation5] sm:$0xff]
    %v48 = vld [vmem:[#allocation5 + $0x8] sm:$0xff]
    %vm49 = vcmask 130048
    %v51 = vsel %vm49, %v45, 0
    %v54 = vsel %vm49, %v46, 0
    %56 = vmatprep.subr.mxu0 0.0
    %57 = vmatpush1.msra.mxu0 0.0
    %58 = vmatprep.subr.mxu0 0.0
    %59 = vmatpush1.msra.mxu0 0.0
    %60 = vmatprep.subr.mxu0 0.0
    %61 = vmatpush1.msra.mxu0 0.0
    %62 = vmatprep.subr.mxu0 0.0
    %63 = vmatpush1.msra.mxu0 0.0
    %64 = vmatprep.subr.mxu0 0.0
    %65 = vmatpush1.msra.mxu0 0.0
    %66 = vmatprep.subr.mxu0 0.0
    %67 = vmatpush1.msra.mxu0 0.0
    %68 = vmatprep.subr.mxu0 0.0
    %69 = vmatpush1.msra.mxu0 0.0
    %70 = vmatprep.subr.mxu0 0.0
    %71 = vmatpush1.msra.mxu0 0.0
    %72 = vmatprep.subr.mxu0 0.0
    %73 = vmatpush1.msra.mxu0 0.0
    %74 = vmatprep.subr.mxu0 0.0
    %75 = vmatpush1.msra.mxu0 0.0
    %76 = vmatprep.subr.mxu0 0.0
    %77 = vmatpush1.msra.mxu0 0.0
    %78 = vmatprep.subr.mxu0 0.0
    %79 = vmatpush1.msra.mxu0 0.0
    %80 = vmatprep.subr.mxu0 0.0
    %81 = vmatpush1.msra.mxu0 0.0
    %82 = vmatprep.subr.mxu0 0.0
    %83 = vmatpush1.msra.mxu0 0.0
    %84 = vmatprep.subr.mxu0 0.0
    %85 = vmatpush1.msra.mxu0 %v48
    %86 = vmatprep.subr.mxu0 0.0
    %87 = vmatpush1.msra.mxu0 %v47
    %88 = vmatprep.subr.mxu0 0.0
    %89 = vmatpush2.msra.mxu0 0.0
    %90 = vmatprep.subr.mxu0 0.0
    %91 = vmatpush2.msra.mxu0 0.0
    %92 = vmatprep.subr.mxu0 0.0
    %93 = vmatpush2.msra.mxu0 0.0
    %94 = vmatprep.subr.mxu0 0.0
    %95 = vmatpush2.msra.mxu0 0.0
    %96 = vmatprep.subr.mxu0 0.0
    %97 = vmatpush2.msra.mxu0 0.0
    %98 = vmatprep.subr.mxu0 0.0
    %99 = vmatpush2.msra.mxu0 0.0
    %100 = vmatprep.subr.mxu0 0.0
    %101 = vmatpush2.msra.mxu0 0.0
    %102 = vmatprep.subr.mxu0 0.0
    %103 = vmatpush2.msra.mxu0 0.0
    %104 = vmatprep.subr.mxu0 0.0
    %105 = vmatpush2.msra.mxu0 0.0
    %106 = vmatprep.subr.mxu0 0.0
    %107 = vmatpush2.msra.mxu0 0.0
    %108 = vmatprep.subr.mxu0 0.0
    %109 = vmatpush2.msra.mxu0 0.0
    %110 = vmatprep.subr.mxu0 0.0
    %111 = vmatpush2.msra.mxu0 0.0
    %112 = vmatprep.subr.mxu0 0.0
    %113 = vmatpush2.msra.mxu0 0.0
    %114 = vmatprep.subr.mxu0 0.0
    %115 = vmatpush2.msra.mxu0 0.0
    %116 = vmatprep.subr.mxu0 0.0
    %117 = vmatpush2.msra.mxu0 0.0
    %118 = vmatprep.subr.mxu0 0.0
    %119 = vmatpush2.msra.mxu0 0.0
    %120 = vmatprep.mubr.f32.mxu0 0.0
    %121 = vmatmul.mubr.f32.gmra.mxu0 %v51
    %v122 = vpop.f32.mrf.mxu0
    %v123 = vadd.f32 0.0, %v122
    %v124 = vpop.f32.mrf.mxu0
    %125 = vmatprep.mubr.f32.mxu0 0.0
    %126 = vmatmul.mubr.f32.gmra.mxu0 %v54
    %v127 = vpop.f32.mrf.mxu0
    %v128 = vadd.f32 0.0, %v127
    %v129 = vpop.f32.mrf.mxu0
    %130 = vdwg.mxu0
    %132 = vset.pattern.permute.xlu0 0
    %133 = vperm.xlu0 %132, %v43
    %v134 = vpop.permute.xlu0 %133
    %137 = vset.pattern.permute.xlu0 0
    %138 = vperm.xlu0 %137, %v44
    %v139 = vpop.permute.xlu0 %138
    %v141 = vadd.f32 %v134, %v123
    %v142 = vadd.f32 %v139, %v128
    %s143 = scalar_lea.vmem [#allocation2], 16
    %v144 = vld [vmem:[%s143] sm:$0xff]
    %v145 = vld [vmem:[%s143 + $0x8] sm:$0xff]
    %s146 = scalar_lea.vmem [#allocation5], 16
    %v147 = vld [vmem:[%s146] sm:$0xff]
    %v148 = vld [vmem:[%s146 + $0x8] sm:$0xff]
    %v150 = vsel %vm49, %v144, 0
    %v153 = vsel %vm49, %v145, 0
    %155 = vmatprep.subr.mxu0 0.0
    %156 = vmatpush1.msra.mxu0 0.0
    %157 = vmatprep.subr.mxu0 0.0
    %158 = vmatpush1.msra.mxu0 0.0
    %159 = vmatprep.subr.mxu0 0.0
    %160 = vmatpush1.msra.mxu0 0.0
    %161 = vmatprep.subr.mxu0 0.0
    %162 = vmatpush1.msra.mxu0 0.0
    %163 = vmatprep.subr.mxu0 0.0
    %164 = vmatpush1.msra.mxu0 0.0
    %165 = vmatprep.subr.mxu0 0.0
    %166 = vmatpush1.msra.mxu0 0.0
    %167 = vmatprep.subr.mxu0 0.0
    %168 = vmatpush1.msra.mxu0 0.0
    %169 = vmatprep.subr.mxu0 0.0
    %170 = vmatpush1.msra.mxu0 0.0
    %171 = vmatprep.subr.mxu0 0.0
    %172 = vmatpush1.msra.mxu0 0.0
    %173 = vmatprep.subr.mxu0 0.0
    %174 = vmatpush1.msra.mxu0 0.0
    %175 = vmatprep.subr.mxu0 0.0
    %176 = vmatpush1.msra.mxu0 0.0
    %177 = vmatprep.subr.mxu0 0.0
    %178 = vmatpush1.msra.mxu0 0.0
    %179 = vmatprep.subr.mxu0 0.0
    %180 = vmatpush1.msra.mxu0 0.0
    %181 = vmatprep.subr.mxu0 0.0
    %182 = vmatpush1.msra.mxu0 0.0
    %183 = vmatprep.subr.mxu0 0.0
    %184 = vmatpush1.msra.mxu0 %v148
    %185 = vmatprep.subr.mxu0 0.0
    %186 = vmatpush1.msra.mxu0 %v147
    %187 = vmatprep.subr.mxu0 0.0
    %188 = vmatpush2.msra.mxu0 0.0
    %189 = vmatprep.subr.mxu0 0.0
    %190 = vmatpush2.msra.mxu0 0.0
    %191 = vmatprep.subr.mxu0 0.0
    %192 = vmatpush2.msra.mxu0 0.0
    %193 = vmatprep.subr.mxu0 0.0
    %194 = vmatpush2.msra.mxu0 0.0
    %195 = vmatprep.subr.mxu0 0.0
    %196 = vmatpush2.msra.mxu0 0.0
    %197 = vmatprep.subr.mxu0 0.0
    %198 = vmatpush2.msra.mxu0 0.0
    %199 = vmatprep.subr.mxu0 0.0
    %200 = vmatpush2.msra.mxu0 0.0
    %201 = vmatprep.subr.mxu0 0.0
    %202 = vmatpush2.msra.mxu0 0.0
    %203 = vmatprep.subr.mxu0 0.0
    %204 = vmatpush2.msra.mxu0 0.0
    %205 = vmatprep.subr.mxu0 0.0
    %206 = vmatpush2.msra.mxu0 0.0
    %207 = vmatprep.subr.mxu0 0.0
    %208 = vmatpush2.msra.mxu0 0.0
    %209 = vmatprep.subr.mxu0 0.0
    %210 = vmatpush2.msra.mxu0 0.0
    %211 = vmatprep.subr.mxu0 0.0
    %212 = vmatpush2.msra.mxu0 0.0
    %213 = vmatprep.subr.mxu0 0.0
    %214 = vmatpush2.msra.mxu0 0.0
    %215 = vmatprep.subr.mxu0 0.0
    %216 = vmatpush2.msra.mxu0 0.0
    %217 = vmatprep.subr.mxu0 0.0
    %218 = vmatpush2.msra.mxu0 0.0
    %219 = vmatprep.mubr.f32.mxu0 0.0
    %220 = vmatmul.mubr.f32.gmra.mxu0 %v150
    %v221 = vpop.f32.mrf.mxu0
    %v222 = vadd.f32 0.0, %v221
    %v223 = vpop.f32.mrf.mxu0
    %224 = vmatprep.mubr.f32.mxu0 0.0
    %225 = vmatmul.mubr.f32.gmra.mxu0 %v153
    %v226 = vpop.f32.mrf.mxu0
    %v227 = vadd.f32 0.0, %v226
    %v228 = vpop.f32.mrf.mxu0
    %229 = vdwg.mxu0
    %v230 = vadd.f32 %v141, %v222
    %v231 = vadd.f32 %v142, %v227
    %s232 = scalar_lea.vmem [#allocation2], 32
    %v233 = vld [vmem:[%s232] sm:$0xff]
    %v234 = vld [vmem:[%s232 + $0x8] sm:$0xff]
    %s235 = scalar_lea.vmem [#allocation5], 32
    %v236 = vld [vmem:[%s235] sm:$0xff]
    %v237 = vld [vmem:[%s235 + $0x8] sm:$0xff]
    %v239 = vsel %vm49, %v233, 0
    %v242 = vsel %vm49, %v234, 0
    %244 = vmatprep.subr.mxu0 0.0
    %245 = vmatpush1.msra.mxu0 0.0
    %246 = vmatprep.subr.mxu0 0.0
    %247 = vmatpush1.msra.mxu0 0.0
    %248 = vmatprep.subr.mxu0 0.0
    %249 = vmatpush1.msra.mxu0 0.0
    %250 = vmatprep.subr.mxu0 0.0
    %251 = vmatpush1.msra.mxu0 0.0
    %252 = vmatprep.subr.mxu0 0.0
    %253 = vmatpush1.msra.mxu0 0.0
    %254 = vmatprep.subr.mxu0 0.0
    %255 = vmatpush1.msra.mxu0 0.0
    %256 = vmatprep.subr.mxu0 0.0
    %257 = vmatpush1.msra.mxu0 0.0
    %258 = vmatprep.subr.mxu0 0.0
    %259 = vmatpush1.msra.mxu0 0.0
    %260 = vmatprep.subr.mxu0 0.0
    %261 = vmatpush1.msra.mxu0 0.0
    %262 = vmatprep.subr.mxu0 0.0
    %263 = vmatpush1.msra.mxu0 0.0
    %264 = vmatprep.subr.mxu0 0.0
    %265 = vmatpush1.msra.mxu0 0.0
    %266 = vmatprep.subr.mxu0 0.0
    %267 = vmatpush1.msra.mxu0 0.0
    %268 = vmatprep.subr.mxu0 0.0
    %269 = vmatpush1.msra.mxu0 0.0
    %270 = vmatprep.subr.mxu0 0.0
    %271 = vmatpush1.msra.mxu0 0.0
    %272 = vmatprep.subr.mxu0 0.0
    %273 = vmatpush1.msra.mxu0 %v237
    %274 = vmatprep.subr.mxu0 0.0
    %275 = vmatpush1.msra.mxu0 %v236
    %276 = vmatprep.subr.mxu0 0.0
    %277 = vmatpush2.msra.mxu0 0.0
    %278 = vmatprep.subr.mxu0 0.0
    %279 = vmatpush2.msra.mxu0 0.0
    %280 = vmatprep.subr.mxu0 0.0
    %281 = vmatpush2.msra.mxu0 0.0
    %282 = vmatprep.subr.mxu0 0.0
    %283 = vmatpush2.msra.mxu0 0.0
    %284 = vmatprep.subr.mxu0 0.0
    %285 = vmatpush2.msra.mxu0 0.0
    %286 = vmatprep.subr.mxu0 0.0
    %287 = vmatpush2.msra.mxu0 0.0
    %288 = vmatprep.subr.mxu0 0.0
    %289 = vmatpush2.msra.mxu0 0.0
    %290 = vmatprep.subr.mxu0 0.0
    %291 = vmatpush2.msra.mxu0 0.0
    %292 = vmatprep.subr.mxu0 0.0
    %293 = vmatpush2.msra.mxu0 0.0
    %294 = vmatprep.subr.mxu0 0.0
    %295 = vmatpush2.msra.mxu0 0.0
    %296 = vmatprep.subr.mxu0 0.0
    %297 = vmatpush2.msra.mxu0 0.0
    %298 = vmatprep.subr.mxu0 0.0
    %299 = vmatpush2.msra.mxu0 0.0
    %300 = vmatprep.subr.mxu0 0.0
    %301 = vmatpush2.msra.mxu0 0.0
    %302 = vmatprep.subr.mxu0 0.0
    %303 = vmatpush2.msra.mxu0 0.0
    %304 = vmatprep.subr.mxu0 0.0
    %305 = vmatpush2.msra.mxu0 0.0
    %306 = vmatprep.subr.mxu0 0.0
    %307 = vmatpush2.msra.mxu0 0.0
    %308 = vmatprep.mubr.f32.mxu0 0.0
    %309 = vmatmul.mubr.f32.gmra.mxu0 %v239
    %v310 = vpop.f32.mrf.mxu0
    %v311 = vadd.f32 0.0, %v310
    %v312 = vpop.f32.mrf.mxu0
    %313 = vmatprep.mubr.f32.mxu0 0.0
    %314 = vmatmul.mubr.f32.gmra.mxu0 %v242
    %v315 = vpop.f32.mrf.mxu0
    %v316 = vadd.f32 0.0, %v315
    %v317 = vpop.f32.mrf.mxu0
    %318 = vdwg.mxu0
    %v319 = vadd.f32 %v230, %v311
    %v320 = vadd.f32 %v231, %v316
    %321 = vst [vmem:[#allocation7] sm:$0xff] %v319
    %322 = vst [vmem:[#allocation7 + $0x8] sm:$0xff] %v320
    %v323 = vld [vmem:[#allocation2] sm:$0xff]
    %v324 = vld [vmem:[#allocation2 + $0x8] sm:$0xff]
    %v325 = vld [vmem:[%s235] sm:$0xff]
    %v326 = vld [vmem:[%s235 + $0x8] sm:$0xff]
    %v328 = vsel %vm49, %v323, 0
    %v331 = vsel %vm49, %v324, 0
    %333 = vmatprep.subr.mxu0 0.0
    %334 = vmatpush1.msra.mxu0 0.0
    %335 = vmatprep.subr.mxu0 0.0
    %336 = vmatpush1.msra.mxu0 0.0
    %337 = vmatprep.subr.mxu0 0.0
    %338 = vmatpush1.msra.mxu0 0.0
    %339 = vmatprep.subr.mxu0 0.0
    %340 = vmatpush1.msra.mxu0 0.0
    %341 = vmatprep.subr.mxu0 0.0
    %342 = vmatpush1.msra.mxu0 0.0
    %343 = vmatprep.subr.mxu0 0.0
    %344 = vmatpush1.msra.mxu0 0.0
    %345 = vmatprep.subr.mxu0 0.0
    %346 = vmatpush1.msra.mxu0 0.0
    %347 = vmatprep.subr.mxu0 0.0
    %348 = vmatpush1.msra.mxu0 0.0
    %349 = vmatprep.subr.mxu0 0.0
    %350 = vmatpush1.msra.mxu0 0.0
    %351 = vmatprep.subr.mxu0 0.0
    %352 = vmatpush1.msra.mxu0 0.0
    %353 = vmatprep.subr.mxu0 0.0
    %354 = vmatpush1.msra.mxu0 0.0
    %355 = vmatprep.subr.mxu0 0.0
    %356 = vmatpush1.msra.mxu0 0.0
    %357 = vmatprep.subr.mxu0 0.0
    %358 = vmatpush1.msra.mxu0 0.0
    %359 = vmatprep.subr.mxu0 0.0
    %360 = vmatpush1.msra.mxu0 0.0
    %361 = vmatprep.subr.mxu0 0.0
    %362 = vmatpush1.msra.mxu0 %v326
    %363 = vmatprep.subr.mxu0 0.0
    %364 = vmatpush1.msra.mxu0 %v325
    %365 = vmatprep.subr.mxu0 0.0
    %366 = vmatpush2.msra.mxu0 0.0
    %367 = vmatprep.subr.mxu0 0.0
    %368 = vmatpush2.msra.mxu0 0.0
    %369 = vmatprep.subr.mxu0 0.0
    %370 = vmatpush2.msra.mxu0 0.0
    %371 = vmatprep.subr.mxu0 0.0
    %372 = vmatpush2.msra.mxu0 0.0
    %373 = vmatprep.subr.mxu0 0.0
    %374 = vmatpush2.msra.mxu0 0.0
    %375 = vmatprep.subr.mxu0 0.0
    %376 = vmatpush2.msra.mxu0 0.0
    %377 = vmatprep.subr.mxu0 0.0
    %378 = vmatpush2.msra.mxu0 0.0
    %379 = vmatprep.subr.mxu0 0.0
    %380 = vmatpush2.msra.mxu0 0.0
    %381 = vmatprep.subr.mxu0 0.0
    %382 = vmatpush2.msra.mxu0 0.0
    %383 = vmatprep.subr.mxu0 0.0
    %384 = vmatpush2.msra.mxu0 0.0
    %385 = vmatprep.subr.mxu0 0.0
    %386 = vmatpush2.msra.mxu0 0.0
    %387 = vmatprep.subr.mxu0 0.0
    %388 = vmatpush2.msra.mxu0 0.0
    %389 = vmatprep.subr.mxu0 0.0
    %390 = vmatpush2.msra.mxu0 0.0
    %391 = vmatprep.subr.mxu0 0.0
    %392 = vmatpush2.msra.mxu0 0.0
    %393 = vmatprep.subr.mxu0 0.0
    %394 = vmatpush2.msra.mxu0 0.0
    %395 = vmatprep.subr.mxu0 0.0
    %396 = vmatpush2.msra.mxu0 0.0
    %397 = vmatprep.mubr.f32.mxu0 0.0
    %398 = vmatmul.mubr.f32.gmra.mxu0 %v328
    %v399 = vpop.f32.mrf.mxu0
    %v400 = vadd.f32 0.0, %v399
    %v401 = vpop.f32.mrf.mxu0
    %402 = vmatprep.mubr.f32.mxu0 0.0
    %403 = vmatmul.mubr.f32.gmra.mxu0 %v331
    %v404 = vpop.f32.mrf.mxu0
    %v405 = vadd.f32 0.0, %v404
    %v406 = vpop.f32.mrf.mxu0
    %407 = vdwg.mxu0
    %v408 = vadd.f32 %v134, %v400
    %v409 = vadd.f32 %v139, %v405
    %v410 = vld [vmem:[%s143] sm:$0xff]
    %v411 = vld [vmem:[%s143 + $0x8] sm:$0xff]
    %s412 = scalar_lea.vmem [#allocation5], 48
    %v413 = vld [vmem:[%s412] sm:$0xff]
    %v414 = vld [vmem:[%s412 + $0x8] sm:$0xff]
    %v416 = vsel %vm49, %v410, 0
    %v419 = vsel %vm49, %v411, 0
    %421 = vmatprep.subr.mxu0 0.0
    %422 = vmatpush1.msra.mxu0 0.0
    %423 = vmatprep.subr.mxu0 0.0
    %424 = vmatpush1.msra.mxu0 0.0
    %425 = vmatprep.subr.mxu0 0.0
    %426 = vmatpush1.msra.mxu0 0.0
    %427 = vmatprep.subr.mxu0 0.0
    %428 = vmatpush1.msra.mxu0 0.0
    %429 = vmatprep.subr.mxu0 0.0
    %430 = vmatpush1.msra.mxu0 0.0
    %431 = vmatprep.subr.mxu0 0.0
    %432 = vmatpush1.msra.mxu0 0.0
    %433 = vmatprep.subr.mxu0 0.0
    %434 = vmatpush1.msra.mxu0 0.0
    %435 = vmatprep.subr.mxu0 0.0
    %436 = vmatpush1.msra.mxu0 0.0
    %437 = vmatprep.subr.mxu0 0.0
    %438 = vmatpush1.msra.mxu0 0.0
    %439 = vmatprep.subr.mxu0 0.0
    %440 = vmatpush1.msra.mxu0 0.0
    %441 = vmatprep.subr.mxu0 0.0
    %442 = vmatpush1.msra.mxu0 0.0
    %443 = vmatprep.subr.mxu0 0.0
    %444 = vmatpush1.msra.mxu0 0.0
    %445 = vmatprep.subr.mxu0 0.0
    %446 = vmatpush1.msra.mxu0 0.0
    %447 = vmatprep.subr.mxu0 0.0
    %448 = vmatpush1.msra.mxu0 0.0
    %449 = vmatprep.subr.mxu0 0.0
    %450 = vmatpush1.msra.mxu0 %v414
    %451 = vmatprep.subr.mxu0 0.0
    %452 = vmatpush1.msra.mxu0 %v413
    %453 = vmatprep.subr.mxu0 0.0
    %454 = vmatpush2.msra.mxu0 0.0
    %455 = vmatprep.subr.mxu0 0.0
    %456 = vmatpush2.msra.mxu0 0.0
    %457 = vmatprep.subr.mxu0 0.0
    %458 = vmatpush2.msra.mxu0 0.0
    %459 = vmatprep.subr.mxu0 0.0
    %460 = vmatpush2.msra.mxu0 0.0
    %461 = vmatprep.subr.mxu0 0.0
    %462 = vmatpush2.msra.mxu0 0.0
    %463 = vmatprep.subr.mxu0 0.0
    %464 = vmatpush2.msra.mxu0 0.0
    %465 = vmatprep.subr.mxu0 0.0
    %466 = vmatpush2.msra.mxu0 0.0
    %467 = vmatprep.subr.mxu0 0.0
    %468 = vmatpush2.msra.mxu0 0.0
    %469 = vmatprep.subr.mxu0 0.0
    %470 = vmatpush2.msra.mxu0 0.0
    %471 = vmatprep.subr.mxu0 0.0
    %472 = vmatpush2.msra.mxu0 0.0
    %473 = vmatprep.subr.mxu0 0.0
    %474 = vmatpush2.msra.mxu0 0.0
    %475 = vmatprep.subr.mxu0 0.0
    %476 = vmatpush2.msra.mxu0 0.0
    %477 = vmatprep.subr.mxu0 0.0
    %478 = vmatpush2.msra.mxu0 0.0
    %479 = vmatprep.subr.mxu0 0.0
    %480 = vmatpush2.msra.mxu0 0.0
    %481 = vmatprep.subr.mxu0 0.0
    %482 = vmatpush2.msra.mxu0 0.0
    %483 = vmatprep.subr.mxu0 0.0
    %484 = vmatpush2.msra.mxu0 0.0
    %485 = vmatprep.mubr.f32.mxu0 0.0
    %486 = vmatmul.mubr.f32.gmra.mxu0 %v416
    %v487 = vpop.f32.mrf.mxu0
    %v488 = vadd.f32 0.0, %v487
    %v489 = vpop.f32.mrf.mxu0
    %490 = vmatprep.mubr.f32.mxu0 0.0
    %491 = vmatmul.mubr.f32.gmra.mxu0 %v419
    %v492 = vpop.f32.mrf.mxu0
    %v493 = vadd.f32 0.0, %v492
    %v494 = vpop.f32.mrf.mxu0
    %495 = vdwg.mxu0
    %v496 = vadd.f32 %v408, %v488
    %v497 = vadd.f32 %v409, %v493
    %v498 = vld [vmem:[%s232] sm:$0xff]
    %v499 = vld [vmem:[%s232 + $0x8] sm:$0xff]
    %s500 = scalar_lea.vmem [#allocation5], 64
    %v501 = vld [vmem:[%s500] sm:$0xff]
    %v502 = vld [vmem:[%s500 + $0x8] sm:$0xff]
    %v504 = vsel %vm49, %v498, 0
    %v507 = vsel %vm49, %v499, 0
    %509 = vmatprep.subr.mxu0 0.0
    %510 = vmatpush1.msra.mxu0 0.0
    %511 = vmatprep.subr.mxu0 0.0
    %512 = vmatpush1.msra.mxu0 0.0
    %513 = vmatprep.subr.mxu0 0.0
    %514 = vmatpush1.msra.mxu0 0.0
    %515 = vmatprep.subr.mxu0 0.0
    %516 = vmatpush1.msra.mxu0 0.0
    %517 = vmatprep.subr.mxu0 0.0
    %518 = vmatpush1.msra.mxu0 0.0
    %519 = vmatprep.subr.mxu0 0.0
    %520 = vmatpush1.msra.mxu0 0.0
    %521 = vmatprep.subr.mxu0 0.0
    %522 = vmatpush1.msra.mxu0 0.0
    %523 = vmatprep.subr.mxu0 0.0
    %524 = vmatpush1.msra.mxu0 0.0
    %525 = vmatprep.subr.mxu0 0.0
    %526 = vmatpush1.msra.mxu0 0.0
    %527 = vmatprep.subr.mxu0 0.0
    %528 = vmatpush1.msra.mxu0 0.0
    %529 = vmatprep.subr.mxu0 0.0
    %530 = vmatpush1.msra.mxu0 0.0
    %531 = vmatprep.subr.mxu0 0.0
    %532 = vmatpush1.msra.mxu0 0.0
    %533 = vmatprep.subr.mxu0 0.0
    %534 = vmatpush1.msra.mxu0 0.0
    %535 = vmatprep.subr.mxu0 0.0
    %536 = vmatpush1.msra.mxu0 0.0
    %537 = vmatprep.subr.mxu0 0.0
    %538 = vmatpush1.msra.mxu0 %v502
    %539 = vmatprep.subr.mxu0 0.0
    %540 = vmatpush1.msra.mxu0 %v501
    %541 = vmatprep.subr.mxu0 0.0
    %542 = vmatpush2.msra.mxu0 0.0
    %543 = vmatprep.subr.mxu0 0.0
    %544 = vmatpush2.msra.mxu0 0.0
    %545 = vmatprep.subr.mxu0 0.0
    %546 = vmatpush2.msra.mxu0 0.0
    %547 = vmatprep.subr.mxu0 0.0
    %548 = vmatpush2.msra.mxu0 0.0
    %549 = vmatprep.subr.mxu0 0.0
    %550 = vmatpush2.msra.mxu0 0.0
    %551 = vmatprep.subr.mxu0 0.0
    %552 = vmatpush2.msra.mxu0 0.0
    %553 = vmatprep.subr.mxu0 0.0
    %554 = vmatpush2.msra.mxu0 0.0
    %555 = vmatprep.subr.mxu0 0.0
    %556 = vmatpush2.msra.mxu0 0.0
    %557 = vmatprep.subr.mxu0 0.0
    %558 = vmatpush2.msra.mxu0 0.0
    %559 = vmatprep.subr.mxu0 0.0
    %560 = vmatpush2.msra.mxu0 0.0
    %561 = vmatprep.subr.mxu0 0.0
    %562 = vmatpush2.msra.mxu0 0.0
    %563 = vmatprep.subr.mxu0 0.0
    %564 = vmatpush2.msra.mxu0 0.0
    %565 = vmatprep.subr.mxu0 0.0
    %566 = vmatpush2.msra.mxu0 0.0
    %567 = vmatprep.subr.mxu0 0.0
    %568 = vmatpush2.msra.mxu0 0.0
    %569 = vmatprep.subr.mxu0 0.0
    %570 = vmatpush2.msra.mxu0 0.0
    %571 = vmatprep.subr.mxu0 0.0
    %572 = vmatpush2.msra.mxu0 0.0
    %573 = vmatprep.mubr.f32.mxu0 0.0
    %574 = vmatmul.mubr.f32.gmra.mxu0 %v504
    %v575 = vpop.f32.mrf.mxu0
    %v576 = vadd.f32 0.0, %v575
    %v577 = vpop.f32.mrf.mxu0
    %578 = vmatprep.mubr.f32.mxu0 0.0
    %579 = vmatmul.mubr.f32.gmra.mxu0 %v507
    %v580 = vpop.f32.mrf.mxu0
    %v581 = vadd.f32 0.0, %v580
    %v582 = vpop.f32.mrf.mxu0
    %583 = vdwg.mxu0
    %v584 = vadd.f32 %v496, %v576
    %v585 = vadd.f32 %v497, %v581
    %s586 = scalar_lea.vmem [#allocation7], 16
    %587 = vst [vmem:[%s586] sm:$0xff] %v584
    %588 = vst [vmem:[%s586 + $0x8] sm:$0xff] %v585
    %v589 = vld [vmem:[#allocation2] sm:$0xff]
    %v590 = vld [vmem:[#allocation2 + $0x8] sm:$0xff]
    %v591 = vld [vmem:[%s500] sm:$0xff]
    %v592 = vld [vmem:[%s500 + $0x8] sm:$0xff]
    %v594 = vsel %vm49, %v589, 0
    %v597 = vsel %vm49, %v590, 0
    %599 = vmatprep.subr.mxu0 0.0
    %600 = vmatpush1.msra.mxu0 0.0
    %601 = vmatprep.subr.mxu0 0.0
    %602 = vmatpush1.msra.mxu0 0.0
    %603 = vmatprep.subr.mxu0 0.0
    %604 = vmatpush1.msra.mxu0 0.0
    %605 = vmatprep.subr.mxu0 0.0
    %606 = vmatpush1.msra.mxu0 0.0
    %607 = vmatprep.subr.mxu0 0.0
    %608 = vmatpush1.msra.mxu0 0.0
    %609 = vmatprep.subr.mxu0 0.0
    %610 = vmatpush1.msra.mxu0 0.0
    %611 = vmatprep.subr.mxu0 0.0
    %612 = vmatpush1.msra.mxu0 0.0
    %613 = vmatprep.subr.mxu0 0.0
    %614 = vmatpush1.msra.mxu0 0.0
    %615 = vmatprep.subr.mxu0 0.0
    %616 = vmatpush1.msra.mxu0 0.0
    %617 = vmatprep.subr.mxu0 0.0
    %618 = vmatpush1.msra.mxu0 0.0
    %619 = vmatprep.subr.mxu0 0.0
    %620 = vmatpush1.msra.mxu0 0.0
    %621 = vmatprep.subr.mxu0 0.0
    %622 = vmatpush1.msra.mxu0 0.0
    %623 = vmatprep.subr.mxu0 0.0
    %624 = vmatpush1.msra.mxu0 0.0
    %625 = vmatprep.subr.mxu0 0.0
    %626 = vmatpush1.msra.mxu0 0.0
    %627 = vmatprep.subr.mxu0 0.0
    %628 = vmatpush1.msra.mxu0 %v592
    %629 = vmatprep.subr.mxu0 0.0
    %630 = vmatpush1.msra.mxu0 %v591
    %631 = vmatprep.subr.mxu0 0.0
    %632 = vmatpush2.msra.mxu0 0.0
    %633 = vmatprep.subr.mxu0 0.0
    %634 = vmatpush2.msra.mxu0 0.0
    %635 = vmatprep.subr.mxu0 0.0
    %636 = vmatpush2.msra.mxu0 0.0
    %637 = vmatprep.subr.mxu0 0.0
    %638 = vmatpush2.msra.mxu0 0.0
    %639 = vmatprep.subr.mxu0 0.0
    %640 = vmatpush2.msra.mxu0 0.0
    %641 = vmatprep.subr.mxu0 0.0
    %642 = vmatpush2.msra.mxu0 0.0
    %643 = vmatprep.subr.mxu0 0.0
    %644 = vmatpush2.msra.mxu0 0.0
    %645 = vmatprep.subr.mxu0 0.0
    %646 = vmatpush2.msra.mxu0 0.0
    %647 = vmatprep.subr.mxu0 0.0
    %648 = vmatpush2.msra.mxu0 0.0
    %649 = vmatprep.subr.mxu0 0.0
    %650 = vmatpush2.msra.mxu0 0.0
    %651 = vmatprep.subr.mxu0 0.0
    %652 = vmatpush2.msra.mxu0 0.0
    %653 = vmatprep.subr.mxu0 0.0
    %654 = vmatpush2.msra.mxu0 0.0
    %655 = vmatprep.subr.mxu0 0.0
    %656 = vmatpush2.msra.mxu0 0.0
    %657 = vmatprep.subr.mxu0 0.0
    %658 = vmatpush2.msra.mxu0 0.0
    %659 = vmatprep.subr.mxu0 0.0
    %660 = vmatpush2.msra.mxu0 0.0
    %661 = vmatprep.subr.mxu0 0.0
    %662 = vmatpush2.msra.mxu0 0.0
    %663 = vmatprep.mubr.f32.mxu0 0.0
    %664 = vmatmul.mubr.f32.gmra.mxu0 %v594
    %v665 = vpop.f32.mrf.mxu0
    %v666 = vadd.f32 0.0, %v665
    %v667 = vpop.f32.mrf.mxu0
    %668 = vmatprep.mubr.f32.mxu0 0.0
    %669 = vmatmul.mubr.f32.gmra.mxu0 %v597
    %v670 = vpop.f32.mrf.mxu0
    %v671 = vadd.f32 0.0, %v670
    %v672 = vpop.f32.mrf.mxu0
    %673 = vdwg.mxu0
    %v674 = vadd.f32 %v134, %v666
    %v675 = vadd.f32 %v139, %v671
    %v676 = vld [vmem:[%s143] sm:$0xff]
    %v677 = vld [vmem:[%s143 + $0x8] sm:$0xff]
    %s678 = scalar_lea.vmem [#allocation5], 80
    %v679 = vld [vmem:[%s678] sm:$0xff]
    %v680 = vld [vmem:[%s678 + $0x8] sm:$0xff]
    %v682 = vsel %vm49, %v676, 0
    %v685 = vsel %vm49, %v677, 0
    %687 = vmatprep.subr.mxu0 0.0
    %688 = vmatpush1.msra.mxu0 0.0
    %689 = vmatprep.subr.mxu0 0.0
    %690 = vmatpush1.msra.mxu0 0.0
    %691 = vmatprep.subr.mxu0 0.0
    %692 = vmatpush1.msra.mxu0 0.0
    %693 = vmatprep.subr.mxu0 0.0
    %694 = vmatpush1.msra.mxu0 0.0
    %695 = vmatprep.subr.mxu0 0.0
    %696 = vmatpush1.msra.mxu0 0.0
    %697 = vmatprep.subr.mxu0 0.0
    %698 = vmatpush1.msra.mxu0 0.0
    %699 = vmatprep.subr.mxu0 0.0
    %700 = vmatpush1.msra.mxu0 0.0
    %701 = vmatprep.subr.mxu0 0.0
    %702 = vmatpush1.msra.mxu0 0.0
    %703 = vmatprep.subr.mxu0 0.0
    %704 = vmatpush1.msra.mxu0 0.0
    %705 = vmatprep.subr.mxu0 0.0
    %706 = vmatpush1.msra.mxu0 0.0
    %707 = vmatprep.subr.mxu0 0.0
    %708 = vmatpush1.msra.mxu0 0.0
    %709 = vmatprep.subr.mxu0 0.0
    %710 = vmatpush1.msra.mxu0 0.0
    %711 = vmatprep.subr.mxu0 0.0
    %712 = vmatpush1.msra.mxu0 0.0
    %713 = vmatprep.subr.mxu0 0.0
    %714 = vmatpush1.msra.mxu0 0.0
    %715 = vmatprep.subr.mxu0 0.0
    %716 = vmatpush1.msra.mxu0 %v680
    %717 = vmatprep.subr.mxu0 0.0
    %718 = vmatpush1.msra.mxu0 %v679
    %719 = vmatprep.subr.mxu0 0.0
    %720 = vmatpush2.msra.mxu0 0.0
    %721 = vmatprep.subr.mxu0 0.0
    %722 = vmatpush2.msra.mxu0 0.0
    %723 = vmatprep.subr.mxu0 0.0
    %724 = vmatpush2.msra.mxu0 0.0
    %725 = vmatprep.subr.mxu0 0.0
    %726 = vmatpush2.msra.mxu0 0.0
    %727 = vmatprep.subr.mxu0 0.0
    %728 = vmatpush2.msra.mxu0 0.0
    %729 = vmatprep.subr.mxu0 0.0
    %730 = vmatpush2.msra.mxu0 0.0
    %731 = vmatprep.subr.mxu0 0.0
    %732 = vmatpush2.msra.mxu0 0.0
    %733 = vmatprep.subr.mxu0 0.0
    %734 = vmatpush2.msra.mxu0 0.0
    %735 = vmatprep.subr.mxu0 0.0
    %736 = vmatpush2.msra.mxu0 0.0
    %737 = vmatprep.subr.mxu0 0.0
    %738 = vmatpush2.msra.mxu0 0.0
    %739 = vmatprep.subr.mxu0 0.0
    %740 = vmatpush2.msra.mxu0 0.0
    %741 = vmatprep.subr.mxu0 0.0
    %742 = vmatpush2.msra.mxu0 0.0
    %743 = vmatprep.subr.mxu0 0.0
    %744 = vmatpush2.msra.mxu0 0.0
    %745 = vmatprep.subr.mxu0 0.0
    %746 = vmatpush2.msra.mxu0 0.0
    %747 = vmatprep.subr.mxu0 0.0
    %748 = vmatpush2.msra.mxu0 0.0
    %749 = vmatprep.subr.mxu0 0.0
    %750 = vmatpush2.msra.mxu0 0.0
    %751 = vmatprep.mubr.f32.mxu0 0.0
    %752 = vmatmul.mubr.f32.gmra.mxu0 %v682
    %v753 = vpop.f32.mrf.mxu0
    %v754 = vadd.f32 0.0, %v753
    %v755 = vpop.f32.mrf.mxu0
    %756 = vmatprep.mubr.f32.mxu0 0.0
    %757 = vmatmul.mubr.f32.gmra.mxu0 %v685
    %v758 = vpop.f32.mrf.mxu0
    %v759 = vadd.f32 0.0, %v758
    %v760 = vpop.f32.mrf.mxu0
    %761 = vdwg.mxu0
    %v762 = vadd.f32 %v674, %v754
    %v763 = vadd.f32 %v675, %v759
    %v764 = vld [vmem:[%s232] sm:$0xff]
    %v765 = vld [vmem:[%s232 + $0x8] sm:$0xff]
    %s766 = scalar_lea.vmem [#allocation5], 96
    %v767 = vld [vmem:[%s766] sm:$0xff]
    %v768 = vld [vmem:[%s766 + $0x8] sm:$0xff]
    %v770 = vsel %vm49, %v764, 0
    %v773 = vsel %vm49, %v765, 0
    %775 = vmatprep.subr.mxu0 0.0
    %776 = vmatpush1.msra.mxu0 0.0
    %777 = vmatprep.subr.mxu0 0.0
    %778 = vmatpush1.msra.mxu0 0.0
    %779 = vmatprep.subr.mxu0 0.0
    %780 = vmatpush1.msra.mxu0 0.0
    %781 = vmatprep.subr.mxu0 0.0
    %782 = vmatpush1.msra.mxu0 0.0
    %783 = vmatprep.subr.mxu0 0.0
    %784 = vmatpush1.msra.mxu0 0.0
    %785 = vmatprep.subr.mxu0 0.0
    %786 = vmatpush1.msra.mxu0 0.0
    %787 = vmatprep.subr.mxu0 0.0
    %788 = vmatpush1.msra.mxu0 0.0
    %789 = vmatprep.subr.mxu0 0.0
    %790 = vmatpush1.msra.mxu0 0.0
    %791 = vmatprep.subr.mxu0 0.0
    %792 = vmatpush1.msra.mxu0 0.0
    %793 = vmatprep.subr.mxu0 0.0
    %794 = vmatpush1.msra.mxu0 0.0
    %795 = vmatprep.subr.mxu0 0.0
    %796 = vmatpush1.msra.mxu0 0.0
    %797 = vmatprep.subr.mxu0 0.0
    %798 = vmatpush1.msra.mxu0 0.0
    %799 = vmatprep.subr.mxu0 0.0
    %800 = vmatpush1.msra.mxu0 0.0
    %801 = vmatprep.subr.mxu0 0.0
    %802 = vmatpush1.msra.mxu0 0.0
    %803 = vmatprep.subr.mxu0 0.0
    %804 = vmatpush1.msra.mxu0 %v768
    %805 = vmatprep.subr.mxu0 0.0
    %806 = vmatpush1.msra.mxu0 %v767
    %807 = vmatprep.subr.mxu0 0.0
    %808 = vmatpush2.msra.mxu0 0.0
    %809 = vmatprep.subr.mxu0 0.0
    %810 = vmatpush2.msra.mxu0 0.0
    %811 = vmatprep.subr.mxu0 0.0
    %812 = vmatpush2.msra.mxu0 0.0
    %813 = vmatprep.subr.mxu0 0.0
    %814 = vmatpush2.msra.mxu0 0.0
    %815 = vmatprep.subr.mxu0 0.0
    %816 = vmatpush2.msra.mxu0 0.0
    %817 = vmatprep.subr.mxu0 0.0
    %818 = vmatpush2.msra.mxu0 0.0
    %819 = vmatprep.subr.mxu0 0.0
    %820 = vmatpush2.msra.mxu0 0.0
    %821 = vmatprep.subr.mxu0 0.0
    %822 = vmatpush2.msra.mxu0 0.0
    %823 = vmatprep.subr.mxu0 0.0
    %824 = vmatpush2.msra.mxu0 0.0
    %825 = vmatprep.subr.mxu0 0.0
    %826 = vmatpush2.msra.mxu0 0.0
    %827 = vmatprep.subr.mxu0 0.0
    %828 = vmatpush2.msra.mxu0 0.0
    %829 = vmatprep.subr.mxu0 0.0
    %830 = vmatpush2.msra.mxu0 0.0
    %831 = vmatprep.subr.mxu0 0.0
    %832 = vmatpush2.msra.mxu0 0.0
    %833 = vmatprep.subr.mxu0 0.0
    %834 = vmatpush2.msra.mxu0 0.0
    %835 = vmatprep.subr.mxu0 0.0
    %836 = vmatpush2.msra.mxu0 0.0
    %837 = vmatprep.subr.mxu0 0.0
    %838 = vmatpush2.msra.mxu0 0.0
    %839 = vmatprep.mubr.f32.mxu0 0.0
    %840 = vmatmul.mubr.f32.gmra.mxu0 %v770
    %v841 = vpop.f32.mrf.mxu0
    %v842 = vadd.f32 0.0, %v841
    %v843 = vpop.f32.mrf.mxu0
    %844 = vmatprep.mubr.f32.mxu0 0.0
    %845 = vmatmul.mubr.f32.gmra.mxu0 %v773
    %v846 = vpop.f32.mrf.mxu0
    %v847 = vadd.f32 0.0, %v846
    %v848 = vpop.f32.mrf.mxu0
    %849 = vdwg.mxu0
    %v850 = vadd.f32 %v762, %v842
    %v851 = vadd.f32 %v763, %v847
    %s852 = scalar_lea.vmem [#allocation7], 32
    %853 = vst [vmem:[%s852] sm:$0xff] %v850
    %854 = vst [vmem:[%s852 + $0x8] sm:$0xff] %v851
    %v855 = vld [vmem:[#allocation2] sm:$0xff]
    %v856 = vld [vmem:[#allocation2 + $0x8] sm:$0xff]
    %v857 = vld [vmem:[%s766] sm:$0xff]
    %v858 = vld [vmem:[%s766 + $0x8] sm:$0xff]
    %v860 = vsel %vm49, %v855, 0
    %v863 = vsel %vm49, %v856, 0
    %865 = vmatprep.subr.mxu0 0.0
    %866 = vmatpush1.msra.mxu0 0.0
    %867 = vmatprep.subr.mxu0 0.0
    %868 = vmatpush1.msra.mxu0 0.0
    %869 = vmatprep.subr.mxu0 0.0
    %870 = vmatpush1.msra.mxu0 0.0
    %871 = vmatprep.subr.mxu0 0.0
    %872 = vmatpush1.msra.mxu0 0.0
    %873 = vmatprep.subr.mxu0 0.0
    %874 = vmatpush1.msra.mxu0 0.0
    %875 = vmatprep.subr.mxu0 0.0
    %876 = vmatpush1.msra.mxu0 0.0
    %877 = vmatprep.subr.mxu0 0.0
    %878 = vmatpush1.msra.mxu0 0.0
    %879 = vmatprep.subr.mxu0 0.0
    %880 = vmatpush1.msra.mxu0 0.0
    %881 = vmatprep.subr.mxu0 0.0
    %882 = vmatpush1.msra.mxu0 0.0
    %883 = vmatprep.subr.mxu0 0.0
    %884 = vmatpush1.msra.mxu0 0.0
    %885 = vmatprep.subr.mxu0 0.0
    %886 = vmatpush1.msra.mxu0 0.0
    %887 = vmatprep.subr.mxu0 0.0
    %888 = vmatpush1.msra.mxu0 0.0
    %889 = vmatprep.subr.mxu0 0.0
    %890 = vmatpush1.msra.mxu0 0.0
    %891 = vmatprep.subr.mxu0 0.0
    %892 = vmatpush1.msra.mxu0 0.0
    %893 = vmatprep.subr.mxu0 0.0
    %894 = vmatpush1.msra.mxu0 %v858
    %895 = vmatprep.subr.mxu0 0.0
    %896 = vmatpush1.msra.mxu0 %v857
    %897 = vmatprep.subr.mxu0 0.0
    %898 = vmatpush2.msra.mxu0 0.0
    %899 = vmatprep.subr.mxu0 0.0
    %900 = vmatpush2.msra.mxu0 0.0
    %901 = vmatprep.subr.mxu0 0.0
    %902 = vmatpush2.msra.mxu0 0.0
    %903 = vmatprep.subr.mxu0 0.0
    %904 = vmatpush2.msra.mxu0 0.0
    %905 = vmatprep.subr.mxu0 0.0
    %906 = vmatpush2.msra.mxu0 0.0
    %907 = vmatprep.subr.mxu0 0.0
    %908 = vmatpush2.msra.mxu0 0.0
    %909 = vmatprep.subr.mxu0 0.0
    %910 = vmatpush2.msra.mxu0 0.0
    %911 = vmatprep.subr.mxu0 0.0
    %912 = vmatpush2.msra.mxu0 0.0
    %913 = vmatprep.subr.mxu0 0.0
    %914 = vmatpush2.msra.mxu0 0.0
    %915 = vmatprep.subr.mxu0 0.0
    %916 = vmatpush2.msra.mxu0 0.0
    %917 = vmatprep.subr.mxu0 0.0
    %918 = vmatpush2.msra.mxu0 0.0
    %919 = vmatprep.subr.mxu0 0.0
    %920 = vmatpush2.msra.mxu0 0.0
    %921 = vmatprep.subr.mxu0 0.0
    %922 = vmatpush2.msra.mxu0 0.0
    %923 = vmatprep.subr.mxu0 0.0
    %924 = vmatpush2.msra.mxu0 0.0
    %925 = vmatprep.subr.mxu0 0.0
    %926 = vmatpush2.msra.mxu0 0.0
    %927 = vmatprep.subr.mxu0 0.0
    %928 = vmatpush2.msra.mxu0 0.0
    %929 = vmatprep.mubr.f32.mxu0 0.0
    %930 = vmatmul.mubr.f32.gmra.mxu0 %v860
    %v931 = vpop.f32.mrf.mxu0
    %v932 = vadd.f32 0.0, %v931
    %v933 = vpop.f32.mrf.mxu0
    %934 = vmatprep.mubr.f32.mxu0 0.0
    %935 = vmatmul.mubr.f32.gmra.mxu0 %v863
    %v936 = vpop.f32.mrf.mxu0
    %v937 = vadd.f32 0.0, %v936
    %v938 = vpop.f32.mrf.mxu0
    %939 = vdwg.mxu0
    %v940 = vadd.f32 %v134, %v932
    %v941 = vadd.f32 %v139, %v937
    %v942 = vld [vmem:[%s143] sm:$0xff]
    %v943 = vld [vmem:[%s143 + $0x8] sm:$0xff]
    %s944 = scalar_lea.vmem [#allocation5], 112
    %v945 = vld [vmem:[%s944] sm:$0xff]
    %v946 = vld [vmem:[%s944 + $0x8] sm:$0xff]
    %v948 = vsel %vm49, %v942, 0
    %v951 = vsel %vm49, %v943, 0
    %953 = vmatprep.subr.mxu0 0.0
    %954 = vmatpush1.msra.mxu0 0.0
    %955 = vmatprep.subr.mxu0 0.0
    %956 = vmatpush1.msra.mxu0 0.0
    %957 = vmatprep.subr.mxu0 0.0
    %958 = vmatpush1.msra.mxu0 0.0
    %959 = vmatprep.subr.mxu0 0.0
    %960 = vmatpush1.msra.mxu0 0.0
    %961 = vmatprep.subr.mxu0 0.0
    %962 = vmatpush1.msra.mxu0 0.0
    %963 = vmatprep.subr.mxu0 0.0
    %964 = vmatpush1.msra.mxu0 0.0
    %965 = vmatprep.subr.mxu0 0.0
    %966 = vmatpush1.msra.mxu0 0.0
    %967 = vmatprep.subr.mxu0 0.0
    %968 = vmatpush1.msra.mxu0 0.0
    %969 = vmatprep.subr.mxu0 0.0
    %970 = vmatpush1.msra.mxu0 0.0
    %971 = vmatprep.subr.mxu0 0.0
    %972 = vmatpush1.msra.mxu0 0.0
    %973 = vmatprep.subr.mxu0 0.0
    %974 = vmatpush1.msra.mxu0 0.0
    %975 = vmatprep.subr.mxu0 0.0
    %976 = vmatpush1.msra.mxu0 0.0
    %977 = vmatprep.subr.mxu0 0.0
    %978 = vmatpush1.msra.mxu0 0.0
    %979 = vmatprep.subr.mxu0 0.0
    %980 = vmatpush1.msra.mxu0 0.0
    %981 = vmatprep.subr.mxu0 0.0
    %982 = vmatpush1.msra.mxu0 %v946
    %983 = vmatprep.subr.mxu0 0.0
    %984 = vmatpush1.msra.mxu0 %v945
    %985 = vmatprep.subr.mxu0 0.0
    %986 = vmatpush2.msra.mxu0 0.0
    %987 = vmatprep.subr.mxu0 0.0
    %988 = vmatpush2.msra.mxu0 0.0
    %989 = vmatprep.subr.mxu0 0.0
    %990 = vmatpush2.msra.mxu0 0.0
    %991 = vmatprep.subr.mxu0 0.0
    %992 = vmatpush2.msra.mxu0 0.0
    %993 = vmatprep.subr.mxu0 0.0
    %994 = vmatpush2.msra.mxu0 0.0
    %995 = vmatprep.subr.mxu0 0.0
    %996 = vmatpush2.msra.mxu0 0.0
    %997 = vmatprep.subr.mxu0 0.0
    %998 = vmatpush2.msra.mxu0 0.0
    %999 = vmatprep.subr.mxu0 0.0
    %1000 = vmatpush2.msra.mxu0 0.0
    %1001 = vmatprep.subr.mxu0 0.0
    %1002 = vmatpush2.msra.mxu0 0.0
    %1003 = vmatprep.subr.mxu0 0.0
    %1004 = vmatpush2.msra.mxu0 0.0
    %1005 = vmatprep.subr.mxu0 0.0
    %1006 = vmatpush2.msra.mxu0 0.0
    %1007 = vmatprep.subr.mxu0 0.0
    %1008 = vmatpush2.msra.mxu0 0.0
    %1009 = vmatprep.subr.mxu0 0.0
    %1010 = vmatpush2.msra.mxu0 0.0
    %1011 = vmatprep.subr.mxu0 0.0
    %1012 = vmatpush2.msra.mxu0 0.0
    %1013 = vmatprep.subr.mxu0 0.0
    %1014 = vmatpush2.msra.mxu0 0.0
    %1015 = vmatprep.subr.mxu0 0.0
    %1016 = vmatpush2.msra.mxu0 0.0
    %1017 = vmatprep.mubr.f32.mxu0 0.0
    %1018 = vmatmul.mubr.f32.gmra.mxu0 %v948
    %v1019 = vpop.f32.mrf.mxu0
    %v1020 = vadd.f32 0.0, %v1019
    %v1021 = vpop.f32.mrf.mxu0
    %1022 = vmatprep.mubr.f32.mxu0 0.0
    %1023 = vmatmul.mubr.f32.gmra.mxu0 %v951
    %v1024 = vpop.f32.mrf.mxu0
    %v1025 = vadd.f32 0.0, %v1024
    %v1026 = vpop.f32.mrf.mxu0
    %1027 = vdwg.mxu0
    %v1028 = vadd.f32 %v940, %v1020
    %v1029 = vadd.f32 %v941, %v1025
    %v1030 = vld [vmem:[%s232] sm:$0xff]
    %v1031 = vld [vmem:[%s232 + $0x8] sm:$0xff]
    %s1032 = scalar_lea.vmem [#allocation5], 128
    %v1033 = vld [vmem:[%s1032] sm:$0xff]
    %v1034 = vld [vmem:[%s1032 + $0x8] sm:$0xff]
    %v1036 = vsel %vm49, %v1030, 0
    %v1039 = vsel %vm49, %v1031, 0
    %1041 = vmatprep.subr.mxu0 0.0
    %1042 = vmatpush1.msra.mxu0 0.0
    %1043 = vmatprep.subr.mxu0 0.0
    %1044 = vmatpush1.msra.mxu0 0.0
    %1045 = vmatprep.subr.mxu0 0.0
    %1046 = vmatpush1.msra.mxu0 0.0
    %1047 = vmatprep.subr.mxu0 0.0
    %1048 = vmatpush1.msra.mxu0 0.0
    %1049 = vmatprep.subr.mxu0 0.0
    %1050 = vmatpush1.msra.mxu0 0.0
    %1051 = vmatprep.subr.mxu0 0.0
    %1052 = vmatpush1.msra.mxu0 0.0
    %1053 = vmatprep.subr.mxu0 0.0
    %1054 = vmatpush1.msra.mxu0 0.0
    %1055 = vmatprep.subr.mxu0 0.0
    %1056 = vmatpush1.msra.mxu0 0.0
    %1057 = vmatprep.subr.mxu0 0.0
    %1058 = vmatpush1.msra.mxu0 0.0
    %1059 = vmatprep.subr.mxu0 0.0
    %1060 = vmatpush1.msra.mxu0 0.0
    %1061 = vmatprep.subr.mxu0 0.0
    %1062 = vmatpush1.msra.mxu0 0.0
    %1063 = vmatprep.subr.mxu0 0.0
    %1064 = vmatpush1.msra.mxu0 0.0
    %1065 = vmatprep.subr.mxu0 0.0
    %1066 = vmatpush1.msra.mxu0 0.0
    %1067 = vmatprep.subr.mxu0 0.0
    %1068 = vmatpush1.msra.mxu0 0.0
    %1069 = vmatprep.subr.mxu0 0.0
    %1070 = vmatpush1.msra.mxu0 %v1034
    %1071 = vmatprep.subr.mxu0 0.0
    %1072 = vmatpush1.msra.mxu0 %v1033
    %1073 = vmatprep.subr.mxu0 0.0
    %1074 = vmatpush2.msra.mxu0 0.0
    %1075 = vmatprep.subr.mxu0 0.0
    %1076 = vmatpush2.msra.mxu0 0.0
    %1077 = vmatprep.subr.mxu0 0.0
    %1078 = vmatpush2.msra.mxu0 0.0
    %1079 = vmatprep.subr.mxu0 0.0
    %1080 = vmatpush2.msra.mxu0 0.0
    %1081 = vmatprep.subr.mxu0 0.0
    %1082 = vmatpush2.msra.mxu0 0.0
    %1083 = vmatprep.subr.mxu0 0.0
    %1084 = vmatpush2.msra.mxu0 0.0
    %1085 = vmatprep.subr.mxu0 0.0
    %1086 = vmatpush2.msra.mxu0 0.0
    %1087 = vmatprep.subr.mxu0 0.0
    %1088 = vmatpush2.msra.mxu0 0.0
    %1089 = vmatprep.subr.mxu0 0.0
    %1090 = vmatpush2.msra.mxu0 0.0
    %1091 = vmatprep.subr.mxu0 0.0
    %1092 = vmatpush2.msra.mxu0 0.0
    %1093 = vmatprep.subr.mxu0 0.0
    %1094 = vmatpush2.msra.mxu0 0.0
    %1095 = vmatprep.subr.mxu0 0.0
    %1096 = vmatpush2.msra.mxu0 0.0
    %1097 = vmatprep.subr.mxu0 0.0
    %1098 = vmatpush2.msra.mxu0 0.0
    %1099 = vmatprep.subr.mxu0 0.0
    %1100 = vmatpush2.msra.mxu0 0.0
    %1101 = vmatprep.subr.mxu0 0.0
    %1102 = vmatpush2.msra.mxu0 0.0
    %1103 = vmatprep.subr.mxu0 0.0
    %1104 = vmatpush2.msra.mxu0 0.0
    %1105 = vmatprep.mubr.f32.mxu0 0.0
    %1106 = vmatmul.mubr.f32.gmra.mxu0 %v1036
    %v1107 = vpop.f32.mrf.mxu0
    %v1108 = vadd.f32 0.0, %v1107
    %v1109 = vpop.f32.mrf.mxu0
    %1110 = vmatprep.mubr.f32.mxu0 0.0
    %1111 = vmatmul.mubr.f32.gmra.mxu0 %v1039
    %v1112 = vpop.f32.mrf.mxu0
    %v1113 = vadd.f32 0.0, %v1112
    %v1114 = vpop.f32.mrf.mxu0
    %1115 = vdwg.mxu0
    %v1116 = vadd.f32 %v1028, %v1108
    %v1117 = vadd.f32 %v1029, %v1113
    %s1118 = scalar_lea.vmem [#allocation7], 48
    %1119 = vst [vmem:[%s1118] sm:$0xff] %v1116
    %1120 = vst [vmem:[%s1118 + $0x8] sm:$0xff] %v1117
    %v1121 = vld [vmem:[#allocation2] sm:$0xff]
    %v1122 = vld [vmem:[#allocation2 + $0x8] sm:$0xff]
    %v1123 = vld [vmem:[%s1032] sm:$0xff]
    %v1124 = vld [vmem:[%s1032 + $0x8] sm:$0xff]
    %v1126 = vsel %vm49, %v1121, 0
    %v1129 = vsel %vm49, %v1122, 0
    %1131 = vmatprep.subr.mxu0 0.0
    %1132 = vmatpush1.msra.mxu0 0.0
    %1133 = vmatprep.subr.mxu0 0.0
    %1134 = vmatpush1.msra.mxu0 0.0
    %1135 = vmatprep.subr.mxu0 0.0
    %1136 = vmatpush1.msra.mxu0 0.0
    %1137 = vmatprep.subr.mxu0 0.0
    %1138 = vmatpush1.msra.mxu0 0.0
    %1139 = vmatprep.subr.mxu0 0.0
    %1140 = vmatpush1.msra.mxu0 0.0
    %1141 = vmatprep.subr.mxu0 0.0
    %1142 = vmatpush1.msra.mxu0 0.0
    %1143 = vmatprep.subr.mxu0 0.0
    %1144 = vmatpush1.msra.mxu0 0.0
    %1145 = vmatprep.subr.mxu0 0.0
    %1146 = vmatpush1.msra.mxu0 0.0
    %1147 = vmatprep.subr.mxu0 0.0
    %1148 = vmatpush1.msra.mxu0 0.0
    %1149 = vmatprep.subr.mxu0 0.0
    %1150 = vmatpush1.msra.mxu0 0.0
    %1151 = vmatprep.subr.mxu0 0.0
    %1152 = vmatpush1.msra.mxu0 0.0
    %1153 = vmatprep.subr.mxu0 0.0
    %1154 = vmatpush1.msra.mxu0 0.0
    %1155 = vmatprep.subr.mxu0 0.0
    %1156 = vmatpush1.msra.mxu0 0.0
    %1157 = vmatprep.subr.mxu0 0.0
    %1158 = vmatpush1.msra.mxu0 0.0
    %1159 = vmatprep.subr.mxu0 0.0
    %1160 = vmatpush1.msra.mxu0 %v1124
    %1161 = vmatprep.subr.mxu0 0.0
    %1162 = vmatpush1.msra.mxu0 %v1123
    %1163 = vmatprep.subr.mxu0 0.0
    %1164 = vmatpush2.msra.mxu0 0.0
    %1165 = vmatprep.subr.mxu0 0.0
    %1166 = vmatpush2.msra.mxu0 0.0
    %1167 = vmatprep.subr.mxu0 0.0
    %1168 = vmatpush2.msra.mxu0 0.0
    %1169 = vmatprep.subr.mxu0 0.0
    %1170 = vmatpush2.msra.mxu0 0.0
    %1171 = vmatprep.subr.mxu0 0.0
    %1172 = vmatpush2.msra.mxu0 0.0
    %1173 = vmatprep.subr.mxu0 0.0
    %1174 = vmatpush2.msra.mxu0 0.0
    %1175 = vmatprep.subr.mxu0 0.0
    %1176 = vmatpush2.msra.mxu0 0.0
    %1177 = vmatprep.subr.mxu0 0.0
    %1178 = vmatpush2.msra.mxu0 0.0
    %1179 = vmatprep.subr.mxu0 0.0
    %1180 = vmatpush2.msra.mxu0 0.0
    %1181 = vmatprep.subr.mxu0 0.0
    %1182 = vmatpush2.msra.mxu0 0.0
    %1183 = vmatprep.subr.mxu0 0.0
    %1184 = vmatpush2.msra.mxu0 0.0
    %1185 = vmatprep.subr.mxu0 0.0
    %1186 = vmatpush2.msra.mxu0 0.0
    %1187 = vmatprep.subr.mxu0 0.0
    %1188 = vmatpush2.msra.mxu0 0.0
    %1189 = vmatprep.subr.mxu0 0.0
    %1190 = vmatpush2.msra.mxu0 0.0
    %1191 = vmatprep.subr.mxu0 0.0
    %1192 = vmatpush2.msra.mxu0 0.0
    %1193 = vmatprep.subr.mxu0 0.0
    %1194 = vmatpush2.msra.mxu0 0.0
    %1195 = vmatprep.mubr.f32.mxu0 0.0
    %1196 = vmatmul.mubr.f32.gmra.mxu0 %v1126
    %v1197 = vpop.f32.mrf.mxu0
    %v1198 = vadd.f32 0.0, %v1197
    %v1199 = vpop.f32.mrf.mxu0
    %1200 = vmatprep.mubr.f32.mxu0 0.0
    %1201 = vmatmul.mubr.f32.gmra.mxu0 %v1129
    %v1202 = vpop.f32.mrf.mxu0
    %v1203 = vadd.f32 0.0, %v1202
    %v1204 = vpop.f32.mrf.mxu0
    %1205 = vdwg.mxu0
    %v1206 = vadd.f32 %v134, %v1198
    %v1207 = vadd.f32 %v139, %v1203
    %v1208 = vld [vmem:[%s143] sm:$0xff]
    %v1209 = vld [vmem:[%s143 + $0x8] sm:$0xff]
    %s1210 = scalar_lea.vmem [#allocation5], 144
    %v1211 = vld [vmem:[%s1210] sm:$0xff]
    %v1212 = vld [vmem:[%s1210 + $0x8] sm:$0xff]
    %v1214 = vsel %vm49, %v1208, 0
    %v1217 = vsel %vm49, %v1209, 0
    %1219 = vmatprep.subr.mxu0 0.0
    %1220 = vmatpush1.msra.mxu0 0.0
    %1221 = vmatprep.subr.mxu0 0.0
    %1222 = vmatpush1.msra.mxu0 0.0
    %1223 = vmatprep.subr.mxu0 0.0
    %1224 = vmatpush1.msra.mxu0 0.0
    %1225 = vmatprep.subr.mxu0 0.0
    %1226 = vmatpush1.msra.mxu0 0.0
    %1227 = vmatprep.subr.mxu0 0.0
    %1228 = vmatpush1.msra.mxu0 0.0
    %1229 = vmatprep.subr.mxu0 0.0
    %1230 = vmatpush1.msra.mxu0 0.0
    %1231 = vmatprep.subr.mxu0 0.0
    %1232 = vmatpush1.msra.mxu0 0.0
    %1233 = vmatprep.subr.mxu0 0.0
    %1234 = vmatpush1.msra.mxu0 0.0
    %1235 = vmatprep.subr.mxu0 0.0
    %1236 = vmatpush1.msra.mxu0 0.0
    %1237 = vmatprep.subr.mxu0 0.0
    %1238 = vmatpush1.msra.mxu0 0.0
    %1239 = vmatprep.subr.mxu0 0.0
    %1240 = vmatpush1.msra.mxu0 0.0
    %1241 = vmatprep.subr.mxu0 0.0
    %1242 = vmatpush1.msra.mxu0 0.0
    %1243 = vmatprep.subr.mxu0 0.0
    %1244 = vmatpush1.msra.mxu0 0.0
    %1245 = vmatprep.subr.mxu0 0.0
    %1246 = vmatpush1.msra.mxu0 0.0
    %1247 = vmatprep.subr.mxu0 0.0
    %1248 = vmatpush1.msra.mxu0 %v1212
    %1249 = vmatprep.subr.mxu0 0.0
    %1250 = vmatpush1.msra.mxu0 %v1211
    %1251 = vmatprep.subr.mxu0 0.0
    %1252 = vmatpush2.msra.mxu0 0.0
    %1253 = vmatprep.subr.mxu0 0.0
    %1254 = vmatpush2.msra.mxu0 0.0
    %1255 = vmatprep.subr.mxu0 0.0
    %1256 = vmatpush2.msra.mxu0 0.0
    %1257 = vmatprep.subr.mxu0 0.0
    %1258 = vmatpush2.msra.mxu0 0.0
    %1259 = vmatprep.subr.mxu0 0.0
    %1260 = vmatpush2.msra.mxu0 0.0
    %1261 = vmatprep.subr.mxu0 0.0
    %1262 = vmatpush2.msra.mxu0 0.0
    %1263 = vmatprep.subr.mxu0 0.0
    %1264 = vmatpush2.msra.mxu0 0.0
    %1265 = vmatprep.subr.mxu0 0.0
    %1266 = vmatpush2.msra.mxu0 0.0
    %1267 = vmatprep.subr.mxu0 0.0
    %1268 = vmatpush2.msra.mxu0 0.0
    %1269 = vmatprep.subr.mxu0 0.0
    %1270 = vmatpush2.msra.mxu0 0.0
    %1271 = vmatprep.subr.mxu0 0.0
    %1272 = vmatpush2.msra.mxu0 0.0
    %1273 = vmatprep.subr.mxu0 0.0
    %1274 = vmatpush2.msra.mxu0 0.0
    %1275 = vmatprep.subr.mxu0 0.0
    %1276 = vmatpush2.msra.mxu0 0.0
    %1277 = vmatprep.subr.mxu0 0.0
    %1278 = vmatpush2.msra.mxu0 0.0
    %1279 = vmatprep.subr.mxu0 0.0
    %1280 = vmatpush2.msra.mxu0 0.0
    %1281 = vmatprep.subr.mxu0 0.0
    %1282 = vmatpush2.msra.mxu0 0.0
    %1283 = vmatprep.mubr.f32.mxu0 0.0
    %1284 = vmatmul.mubr.f32.gmra.mxu0 %v1214
    %v1285 = vpop.f32.mrf.mxu0
    %v1286 = vadd.f32 0.0, %v1285
    %v1287 = vpop.f32.mrf.mxu0
    %1288 = vmatprep.mubr.f32.mxu0 0.0
    %1289 = vmatmul.mubr.f32.gmra.mxu0 %v1217
    %v1290 = vpop.f32.mrf.mxu0
    %v1291 = vadd.f32 0.0, %v1290
    %v1292 = vpop.f32.mrf.mxu0
    %1293 = vdwg.mxu0
    %v1294 = vadd.f32 %v1206, %v1286
    %v1295 = vadd.f32 %v1207, %v1291
    %v1296 = vld [vmem:[%s232] sm:$0xff]
    %v1297 = vld [vmem:[%s232 + $0x8] sm:$0xff]
    %s1298 = scalar_lea.vmem [#allocation5], 160
    %v1299 = vld [vmem:[%s1298] sm:$0xff]
    %v1300 = vld [vmem:[%s1298 + $0x8] sm:$0xff]
    %v1302 = vsel %vm49, %v1296, 0
    %v1305 = vsel %vm49, %v1297, 0
    %1307 = vmatprep.subr.mxu0 0.0
    %1308 = vmatpush1.msra.mxu0 0.0
    %1309 = vmatprep.subr.mxu0 0.0
    %1310 = vmatpush1.msra.mxu0 0.0
    %1311 = vmatprep.subr.mxu0 0.0
    %1312 = vmatpush1.msra.mxu0 0.0
    %1313 = vmatprep.subr.mxu0 0.0
    %1314 = vmatpush1.msra.mxu0 0.0
    %1315 = vmatprep.subr.mxu0 0.0
    %1316 = vmatpush1.msra.mxu0 0.0
    %1317 = vmatprep.subr.mxu0 0.0
    %1318 = vmatpush1.msra.mxu0 0.0
    %1319 = vmatprep.subr.mxu0 0.0
    %1320 = vmatpush1.msra.mxu0 0.0
    %1321 = vmatprep.subr.mxu0 0.0
    %1322 = vmatpush1.msra.mxu0 0.0
    %1323 = vmatprep.subr.mxu0 0.0
    %1324 = vmatpush1.msra.mxu0 0.0
    %1325 = vmatprep.subr.mxu0 0.0
    %1326 = vmatpush1.msra.mxu0 0.0
    %1327 = vmatprep.subr.mxu0 0.0
    %1328 = vmatpush1.msra.mxu0 0.0
    %1329 = vmatprep.subr.mxu0 0.0
    %1330 = vmatpush1.msra.mxu0 0.0
    %1331 = vmatprep.subr.mxu0 0.0
    %1332 = vmatpush1.msra.mxu0 0.0
    %1333 = vmatprep.subr.mxu0 0.0
    %1334 = vmatpush1.msra.mxu0 0.0
    %1335 = vmatprep.subr.mxu0 0.0
    %1336 = vmatpush1.msra.mxu0 %v1300
    %1337 = vmatprep.subr.mxu0 0.0
    %1338 = vmatpush1.msra.mxu0 %v1299
    %1339 = vmatprep.subr.mxu0 0.0
    %1340 = vmatpush2.msra.mxu0 0.0
    %1341 = vmatprep.subr.mxu0 0.0
    %1342 = vmatpush2.msra.mxu0 0.0
    %1343 = vmatprep.subr.mxu0 0.0
    %1344 = vmatpush2.msra.mxu0 0.0
    %1345 = vmatprep.subr.mxu0 0.0
    %1346 = vmatpush2.msra.mxu0 0.0
    %1347 = vmatprep.subr.mxu0 0.0
    %1348 = vmatpush2.msra.mxu0 0.0
    %1349 = vmatprep.subr.mxu0 0.0
    %1350 = vmatpush2.msra.mxu0 0.0
    %1351 = vmatprep.subr.mxu0 0.0
    %1352 = vmatpush2.msra.mxu0 0.0
    %1353 = vmatprep.subr.mxu0 0.0
    %1354 = vmatpush2.msra.mxu0 0.0
    %1355 = vmatprep.subr.mxu0 0.0
    %1356 = vmatpush2.msra.mxu0 0.0
    %1357 = vmatprep.subr.mxu0 0.0
    %1358 = vmatpush2.msra.mxu0 0.0
    %1359 = vmatprep.subr.mxu0 0.0
    %1360 = vmatpush2.msra.mxu0 0.0
    %1361 = vmatprep.subr.mxu0 0.0
    %1362 = vmatpush2.msra.mxu0 0.0
    %1363 = vmatprep.subr.mxu0 0.0
    %1364 = vmatpush2.msra.mxu0 0.0
    %1365 = vmatprep.subr.mxu0 0.0
    %1366 = vmatpush2.msra.mxu0 0.0
    %1367 = vmatprep.subr.mxu0 0.0
    %1368 = vmatpush2.msra.mxu0 0.0
    %1369 = vmatprep.subr.mxu0 0.0
    %1370 = vmatpush2.msra.mxu0 0.0
    %1371 = vmatprep.mubr.f32.mxu0 0.0
    %1372 = vmatmul.mubr.f32.gmra.mxu0 %v1302
    %v1373 = vpop.f32.mrf.mxu0
    %v1374 = vadd.f32 0.0, %v1373
    %v1375 = vpop.f32.mrf.mxu0
    %1376 = vmatprep.mubr.f32.mxu0 0.0
    %1377 = vmatmul.mubr.f32.gmra.mxu0 %v1305
    %v1378 = vpop.f32.mrf.mxu0
    %v1379 = vadd.f32 0.0, %v1378
    %v1380 = vpop.f32.mrf.mxu0
    %1381 = vdwg.mxu0
    %v1382 = vadd.f32 %v1294, %v1374
    %v1383 = vadd.f32 %v1295, %v1379
    %s1384 = scalar_lea.vmem [#allocation7], 64
    %1385 = vst [vmem:[%s1384] sm:$0xff] %v1382
    %1386 = vst [vmem:[%s1384 + $0x8] sm:$0xff] %v1383
    %v1387 = vld [vmem:[#allocation2] sm:$0xff]
    %v1388 = vld [vmem:[#allocation2 + $0x8] sm:$0xff]
    %v1389 = vld [vmem:[%s1298] sm:$0xff]
    %v1390 = vld [vmem:[%s1298 + $0x8] sm:$0xff]
    %v1392 = vsel %vm49, %v1387, 0
    %v1395 = vsel %vm49, %v1388, 0
    %1397 = vmatprep.subr.mxu0 0.0
    %1398 = vmatpush1.msra.mxu0 0.0
    %1399 = vmatprep.subr.mxu0 0.0
    %1400 = vmatpush1.msra.mxu0 0.0
    %1401 = vmatprep.subr.mxu0 0.0
    %1402 = vmatpush1.msra.mxu0 0.0
    %1403 = vmatprep.subr.mxu0 0.0
    %1404 = vmatpush1.msra.mxu0 0.0
    %1405 = vmatprep.subr.mxu0 0.0
    %1406 = vmatpush1.msra.mxu0 0.0
    %1407 = vmatprep.subr.mxu0 0.0
    %1408 = vmatpush1.msra.mxu0 0.0
    %1409 = vmatprep.subr.mxu0 0.0
    %1410 = vmatpush1.msra.mxu0 0.0
    %1411 = vmatprep.subr.mxu0 0.0
    %1412 = vmatpush1.msra.mxu0 0.0
    %1413 = vmatprep.subr.mxu0 0.0
    %1414 = vmatpush1.msra.mxu0 0.0
    %1415 = vmatprep.subr.mxu0 0.0
    %1416 = vmatpush1.msra.mxu0 0.0
    %1417 = vmatprep.subr.mxu0 0.0
    %1418 = vmatpush1.msra.mxu0 0.0
    %1419 = vmatprep.subr.mxu0 0.0
    %1420 = vmatpush1.msra.mxu0 0.0
    %1421 = vmatprep.subr.mxu0 0.0
    %1422 = vmatpush1.msra.mxu0 0.0
    %1423 = vmatprep.subr.mxu0 0.0
    %1424 = vmatpush1.msra.mxu0 0.0
    %1425 = vmatprep.subr.mxu0 0.0
    %1426 = vmatpush1.msra.mxu0 %v1390
    %1427 = vmatprep.subr.mxu0 0.0
    %1428 = vmatpush1.msra.mxu0 %v1389
    %1429 = vmatprep.subr.mxu0 0.0
    %1430 = vmatpush2.msra.mxu0 0.0
    %1431 = vmatprep.subr.mxu0 0.0
    %1432 = vmatpush2.msra.mxu0 0.0
    %1433 = vmatprep.subr.mxu0 0.0
    %1434 = vmatpush2.msra.mxu0 0.0
    %1435 = vmatprep.subr.mxu0 0.0
    %1436 = vmatpush2.msra.mxu0 0.0
    %1437 = vmatprep.subr.mxu0 0.0
    %1438 = vmatpush2.msra.mxu0 0.0
    %1439 = vmatprep.subr.mxu0 0.0
    %1440 = vmatpush2.msra.mxu0 0.0
    %1441 = vmatprep.subr.mxu0 0.0
    %1442 = vmatpush2.msra.mxu0 0.0
    %1443 = vmatprep.subr.mxu0 0.0
    %1444 = vmatpush2.msra.mxu0 0.0
    %1445 = vmatprep.subr.mxu0 0.0
    %1446 = vmatpush2.msra.mxu0 0.0
    %1447 = vmatprep.subr.mxu0 0.0
    %1448 = vmatpush2.msra.mxu0 0.0
    %1449 = vmatprep.subr.mxu0 0.0
    %1450 = vmatpush2.msra.mxu0 0.0
    %1451 = vmatprep.subr.mxu0 0.0
    %1452 = vmatpush2.msra.mxu0 0.0
    %1453 = vmatprep.subr.mxu0 0.0
    %1454 = vmatpush2.msra.mxu0 0.0
    %1455 = vmatprep.subr.mxu0 0.0
    %1456 = vmatpush2.msra.mxu0 0.0
    %1457 = vmatprep.subr.mxu0 0.0
    %1458 = vmatpush2.msra.mxu0 0.0
    %1459 = vmatprep.subr.mxu0 0.0
    %1460 = vmatpush2.msra.mxu0 0.0
    %1461 = vmatprep.mubr.f32.mxu0 0.0
    %1462 = vmatmul.mubr.f32.gmra.mxu0 %v1392
    %v1463 = vpop.f32.mrf.mxu0
    %v1464 = vadd.f32 0.0, %v1463
    %v1465 = vpop.f32.mrf.mxu0
    %1466 = vmatprep.mubr.f32.mxu0 0.0
    %1467 = vmatmul.mubr.f32.gmra.mxu0 %v1395
    %v1468 = vpop.f32.mrf.mxu0
    %v1469 = vadd.f32 0.0, %v1468
    %v1470 = vpop.f32.mrf.mxu0
    %1471 = vdwg.mxu0
    %v1472 = vadd.f32 %v134, %v1464
    %v1473 = vadd.f32 %v139, %v1469
    %v1474 = vld [vmem:[%s143] sm:$0xff]
    %v1475 = vld [vmem:[%s143 + $0x8] sm:$0xff]
    %s1476 = scalar_lea.vmem [#allocation5], 176
    %v1477 = vld [vmem:[%s1476] sm:$0xff]
    %v1478 = vld [vmem:[%s1476 + $0x8] sm:$0xff]
    %v1480 = vsel %vm49, %v1474, 0
    %v1483 = vsel %vm49, %v1475, 0
    %1485 = vmatprep.subr.mxu0 0.0
    %1486 = vmatpush1.msra.mxu0 0.0
    %1487 = vmatprep.subr.mxu0 0.0
    %1488 = vmatpush1.msra.mxu0 0.0
    %1489 = vmatprep.subr.mxu0 0.0
    %1490 = vmatpush1.msra.mxu0 0.0
    %1491 = vmatprep.subr.mxu0 0.0
    %1492 = vmatpush1.msra.mxu0 0.0
    %1493 = vmatprep.subr.mxu0 0.0
    %1494 = vmatpush1.msra.mxu0 0.0
    %1495 = vmatprep.subr.mxu0 0.0
    %1496 = vmatpush1.msra.mxu0 0.0
    %1497 = vmatprep.subr.mxu0 0.0
    %1498 = vmatpush1.msra.mxu0 0.0
    %1499 = vmatprep.subr.mxu0 0.0
    %1500 = vmatpush1.msra.mxu0 0.0
    %1501 = vmatprep.subr.mxu0 0.0
    %1502 = vmatpush1.msra.mxu0 0.0
    %1503 = vmatprep.subr.mxu0 0.0
    %1504 = vmatpush1.msra.mxu0 0.0
    %1505 = vmatprep.subr.mxu0 0.0
    %1506 = vmatpush1.msra.mxu0 0.0
    %1507 = vmatprep.subr.mxu0 0.0
    %1508 = vmatpush1.msra.mxu0 0.0
    %1509 = vmatprep.subr.mxu0 0.0
    %1510 = vmatpush1.msra.mxu0 0.0
    %1511 = vmatprep.subr.mxu0 0.0
    %1512 = vmatpush1.msra.mxu0 0.0
    %1513 = vmatprep.subr.mxu0 0.0
    %1514 = vmatpush1.msra.mxu0 %v1478
    %1515 = vmatprep.subr.mxu0 0.0
    %1516 = vmatpush1.msra.mxu0 %v1477
    %1517 = vmatprep.subr.mxu0 0.0
    %1518 = vmatpush2.msra.mxu0 0.0
    %1519 = vmatprep.subr.mxu0 0.0
    %1520 = vmatpush2.msra.mxu0 0.0
    %1521 = vmatprep.subr.mxu0 0.0
    %1522 = vmatpush2.msra.mxu0 0.0
    %1523 = vmatprep.subr.mxu0 0.0
    %1524 = vmatpush2.msra.mxu0 0.0
    %1525 = vmatprep.subr.mxu0 0.0
    %1526 = vmatpush2.msra.mxu0 0.0
    %1527 = vmatprep.subr.mxu0 0.0
    %1528 = vmatpush2.msra.mxu0 0.0
    %1529 = vmatprep.subr.mxu0 0.0
    %1530 = vmatpush2.msra.mxu0 0.0
    %1531 = vmatprep.subr.mxu0 0.0
    %1532 = vmatpush2.msra.mxu0 0.0
    %1533 = vmatprep.subr.mxu0 0.0
    %1534 = vmatpush2.msra.mxu0 0.0
    %1535 = vmatprep.subr.mxu0 0.0
    %1536 = vmatpush2.msra.mxu0 0.0
    %1537 = vmatprep.subr.mxu0 0.0
    %1538 = vmatpush2.msra.mxu0 0.0
    %1539 = vmatprep.subr.mxu0 0.0
    %1540 = vmatpush2.msra.mxu0 0.0
    %1541 = vmatprep.subr.mxu0 0.0
    %1542 = vmatpush2.msra.mxu0 0.0
    %1543 = vmatprep.subr.mxu0 0.0
    %1544 = vmatpush2.msra.mxu0 0.0
    %1545 = vmatprep.subr.mxu0 0.0
    %1546 = vmatpush2.msra.mxu0 0.0
    %1547 = vmatprep.subr.mxu0 0.0
    %1548 = vmatpush2.msra.mxu0 0.0
    %1549 = vmatprep.mubr.f32.mxu0 0.0
    %1550 = vmatmul.mubr.f32.gmra.mxu0 %v1480
    %v1551 = vpop.f32.mrf.mxu0
    %v1552 = vadd.f32 0.0, %v1551
    %v1553 = vpop.f32.mrf.mxu0
    %1554 = vmatprep.mubr.f32.mxu0 0.0
    %1555 = vmatmul.mubr.f32.gmra.mxu0 %v1483
    %v1556 = vpop.f32.mrf.mxu0
    %v1557 = vadd.f32 0.0, %v1556
    %v1558 = vpop.f32.mrf.mxu0
    %1559 = vdwg.mxu0
    %v1560 = vadd.f32 %v1472, %v1552
    %v1561 = vadd.f32 %v1473, %v1557
    %v1562 = vld [vmem:[%s232] sm:$0xff]
    %v1563 = vld [vmem:[%s232 + $0x8] sm:$0xff]
    %s1564 = scalar_lea.vmem [#allocation5], 192
    %v1565 = vld [vmem:[%s1564] sm:$0xff]
    %v1566 = vld [vmem:[%s1564 + $0x8] sm:$0xff]
    %v1568 = vsel %vm49, %v1562, 0
    %v1571 = vsel %vm49, %v1563, 0
    %1573 = vmatprep.subr.mxu0 0.0
    %1574 = vmatpush1.msra.mxu0 0.0
    %1575 = vmatprep.subr.mxu0 0.0
    %1576 = vmatpush1.msra.mxu0 0.0
    %1577 = vmatprep.subr.mxu0 0.0
    %1578 = vmatpush1.msra.mxu0 0.0
    %1579 = vmatprep.subr.mxu0 0.0
    %1580 = vmatpush1.msra.mxu0 0.0
    %1581 = vmatprep.subr.mxu0 0.0
    %1582 = vmatpush1.msra.mxu0 0.0
    %1583 = vmatprep.subr.mxu0 0.0
    %1584 = vmatpush1.msra.mxu0 0.0
    %1585 = vmatprep.subr.mxu0 0.0
    %1586 = vmatpush1.msra.mxu0 0.0
    %1587 = vmatprep.subr.mxu0 0.0
    %1588 = vmatpush1.msra.mxu0 0.0
    %1589 = vmatprep.subr.mxu0 0.0
    %1590 = vmatpush1.msra.mxu0 0.0
    %1591 = vmatprep.subr.mxu0 0.0
    %1592 = vmatpush1.msra.mxu0 0.0
    %1593 = vmatprep.subr.mxu0 0.0
    %1594 = vmatpush1.msra.mxu0 0.0
    %1595 = vmatprep.subr.mxu0 0.0
    %1596 = vmatpush1.msra.mxu0 0.0
    %1597 = vmatprep.subr.mxu0 0.0
    %1598 = vmatpush1.msra.mxu0 0.0
    %1599 = vmatprep.subr.mxu0 0.0
    %1600 = vmatpush1.msra.mxu0 0.0
    %1601 = vmatprep.subr.mxu0 0.0
    %1602 = vmatpush1.msra.mxu0 %v1566
    %1603 = vmatprep.subr.mxu0 0.0
    %1604 = vmatpush1.msra.mxu0 %v1565
    %1605 = vmatprep.subr.mxu0 0.0
    %1606 = vmatpush2.msra.mxu0 0.0
    %1607 = vmatprep.subr.mxu0 0.0
    %1608 = vmatpush2.msra.mxu0 0.0
    %1609 = vmatprep.subr.mxu0 0.0
    %1610 = vmatpush2.msra.mxu0 0.0
    %1611 = vmatprep.subr.mxu0 0.0
    %1612 = vmatpush2.msra.mxu0 0.0
    %1613 = vmatprep.subr.mxu0 0.0
    %1614 = vmatpush2.msra.mxu0 0.0
    %1615 = vmatprep.subr.mxu0 0.0
    %1616 = vmatpush2.msra.mxu0 0.0
    %1617 = vmatprep.subr.mxu0 0.0
    %1618 = vmatpush2.msra.mxu0 0.0
    %1619 = vmatprep.subr.mxu0 0.0
    %1620 = vmatpush2.msra.mxu0 0.0
    %1621 = vmatprep.subr.mxu0 0.0
    %1622 = vmatpush2.msra.mxu0 0.0
    %1623 = vmatprep.subr.mxu0 0.0
    %1624 = vmatpush2.msra.mxu0 0.0
    %1625 = vmatprep.subr.mxu0 0.0
    %1626 = vmatpush2.msra.mxu0 0.0
    %1627 = vmatprep.subr.mxu0 0.0
    %1628 = vmatpush2.msra.mxu0 0.0
    %1629 = vmatprep.subr.mxu0 0.0
    %1630 = vmatpush2.msra.mxu0 0.0
    %1631 = vmatprep.subr.mxu0 0.0
    %1632 = vmatpush2.msra.mxu0 0.0
    %1633 = vmatprep.subr.mxu0 0.0
    %1634 = vmatpush2.msra.mxu0 0.0
    %1635 = vmatprep.subr.mxu0 0.0
    %1636 = vmatpush2.msra.mxu0 0.0
    %1637 = vmatprep.mubr.f32.mxu0 0.0
    %1638 = vmatmul.mubr.f32.gmra.mxu0 %v1568
    %v1639 = vpop.f32.mrf.mxu0
    %v1640 = vadd.f32 0.0, %v1639
    %v1641 = vpop.f32.mrf.mxu0
    %1642 = vmatprep.mubr.f32.mxu0 0.0
    %1643 = vmatmul.mubr.f32.gmra.mxu0 %v1571
    %v1644 = vpop.f32.mrf.mxu0
    %v1645 = vadd.f32 0.0, %v1644
    %v1646 = vpop.f32.mrf.mxu0
    %1647 = vdwg.mxu0
    %v1648 = vadd.f32 %v1560, %v1640
    %v1649 = vadd.f32 %v1561, %v1645
    %s1650 = scalar_lea.vmem [#allocation7], 80
    %1651 = vst [vmem:[%s1650] sm:$0xff] %v1648
    %1652 = vst [vmem:[%s1650 + $0x8] sm:$0xff] %v1649
    %v1653 = vld [vmem:[#allocation2] sm:$0xff]
    %v1654 = vld [vmem:[#allocation2 + $0x8] sm:$0xff]
    %v1655 = vld [vmem:[%s1564] sm:$0xff]
    %v1656 = vld [vmem:[%s1564 + $0x8] sm:$0xff]
    %v1658 = vsel %vm49, %v1653, 0
    %v1661 = vsel %vm49, %v1654, 0
    %1663 = vmatprep.subr.mxu0 0.0
    %1664 = vmatpush1.msra.mxu0 0.0
    %1665 = vmatprep.subr.mxu0 0.0
    %1666 = vmatpush1.msra.mxu0 0.0
    %1667 = vmatprep.subr.mxu0 0.0
    %1668 = vmatpush1.msra.mxu0 0.0
    %1669 = vmatprep.subr.mxu0 0.0
    %1670 = vmatpush1.msra.mxu0 0.0
    %1671 = vmatprep.subr.mxu0 0.0
    %1672 = vmatpush1.msra.mxu0 0.0
    %1673 = vmatprep.subr.mxu0 0.0
    %1674 = vmatpush1.msra.mxu0 0.0
    %1675 = vmatprep.subr.mxu0 0.0
    %1676 = vmatpush1.msra.mxu0 0.0
    %1677 = vmatprep.subr.mxu0 0.0
    %1678 = vmatpush1.msra.mxu0 0.0
    %1679 = vmatprep.subr.mxu0 0.0
    %1680 = vmatpush1.msra.mxu0 0.0
    %1681 = vmatprep.subr.mxu0 0.0
    %1682 = vmatpush1.msra.mxu0 0.0
    %1683 = vmatprep.subr.mxu0 0.0
    %1684 = vmatpush1.msra.mxu0 0.0
    %1685 = vmatprep.subr.mxu0 0.0
    %1686 = vmatpush1.msra.mxu0 0.0
    %1687 = vmatprep.subr.mxu0 0.0
    %1688 = vmatpush1.msra.mxu0 0.0
    %1689 = vmatprep.subr.mxu0 0.0
    %1690 = vmatpush1.msra.mxu0 0.0
    %1691 = vmatprep.subr.mxu0 0.0
    %1692 = vmatpush1.msra.mxu0 %v1656
    %1693 = vmatprep.subr.mxu0 0.0
    %1694 = vmatpush1.msra.mxu0 %v1655
    %1695 = vmatprep.subr.mxu0 0.0
    %1696 = vmatpush2.msra.mxu0 0.0
    %1697 = vmatprep.subr.mxu0 0.0
    %1698 = vmatpush2.msra.mxu0 0.0
    %1699 = vmatprep.subr.mxu0 0.0
    %1700 = vmatpush2.msra.mxu0 0.0
    %1701 = vmatprep.subr.mxu0 0.0
    %1702 = vmatpush2.msra.mxu0 0.0
    %1703 = vmatprep.subr.mxu0 0.0
    %1704 = vmatpush2.msra.mxu0 0.0
    %1705 = vmatprep.subr.mxu0 0.0
    %1706 = vmatpush2.msra.mxu0 0.0
    %1707 = vmatprep.subr.mxu0 0.0
    %1708 = vmatpush2.msra.mxu0 0.0
    %1709 = vmatprep.subr.mxu0 0.0
    %1710 = vmatpush2.msra.mxu0 0.0
    %1711 = vmatprep.subr.mxu0 0.0
    %1712 = vmatpush2.msra.mxu0 0.0
    %1713 = vmatprep.subr.mxu0 0.0
    %1714 = vmatpush2.msra.mxu0 0.0
    %1715 = vmatprep.subr.mxu0 0.0
    %1716 = vmatpush2.msra.mxu0 0.0
    %1717 = vmatprep.subr.mxu0 0.0
    %1718 = vmatpush2.msra.mxu0 0.0
    %1719 = vmatprep.subr.mxu0 0.0
    %1720 = vmatpush2.msra.mxu0 0.0
    %1721 = vmatprep.subr.mxu0 0.0
    %1722 = vmatpush2.msra.mxu0 0.0
    %1723 = vmatprep.subr.mxu0 0.0
    %1724 = vmatpush2.msra.mxu0 0.0
    %1725 = vmatprep.subr.mxu0 0.0
    %1726 = vmatpush2.msra.mxu0 0.0
    %1727 = vmatprep.mubr.f32.mxu0 0.0
    %1728 = vmatmul.mubr.f32.gmra.mxu0 %v1658
    %v1729 = vpop.f32.mrf.mxu0
    %v1730 = vadd.f32 0.0, %v1729
    %v1731 = vpop.f32.mrf.mxu0
    %1732 = vmatprep.mubr.f32.mxu0 0.0
    %1733 = vmatmul.mubr.f32.gmra.mxu0 %v1661
    %v1734 = vpop.f32.mrf.mxu0
    %v1735 = vadd.f32 0.0, %v1734
    %v1736 = vpop.f32.mrf.mxu0
    %1737 = vdwg.mxu0
    %v1738 = vadd.f32 %v134, %v1730
    %v1739 = vadd.f32 %v139, %v1735
    %v1740 = vld [vmem:[%s143] sm:$0xff]
    %v1741 = vld [vmem:[%s143 + $0x8] sm:$0xff]
    %s1742 = scalar_lea.vmem [#allocation5], 208
    %v1743 = vld [vmem:[%s1742] sm:$0xff]
    %v1744 = vld [vmem:[%s1742 + $0x8] sm:$0xff]
    %v1746 = vsel %vm49, %v1740, 0
    %v1749 = vsel %vm49, %v1741, 0
    %1751 = vmatprep.subr.mxu0 0.0
    %1752 = vmatpush1.msra.mxu0 0.0
    %1753 = vmatprep.subr.mxu0 0.0
    %1754 = vmatpush1.msra.mxu0 0.0
    %1755 = vmatprep.subr.mxu0 0.0
    %1756 = vmatpush1.msra.mxu0 0.0
    %1757 = vmatprep.subr.mxu0 0.0
    %1758 = vmatpush1.msra.mxu0 0.0
    %1759 = vmatprep.subr.mxu0 0.0
    %1760 = vmatpush1.msra.mxu0 0.0
    %1761 = vmatprep.subr.mxu0 0.0
    %1762 = vmatpush1.msra.mxu0 0.0
    %1763 = vmatprep.subr.mxu0 0.0
    %1764 = vmatpush1.msra.mxu0 0.0
    %1765 = vmatprep.subr.mxu0 0.0
    %1766 = vmatpush1.msra.mxu0 0.0
    %1767 = vmatprep.subr.mxu0 0.0
    %1768 = vmatpush1.msra.mxu0 0.0
    %1769 = vmatprep.subr.mxu0 0.0
    %1770 = vmatpush1.msra.mxu0 0.0
    %1771 = vmatprep.subr.mxu0 0.0
    %1772 = vmatpush1.msra.mxu0 0.0
    %1773 = vmatprep.subr.mxu0 0.0
    %1774 = vmatpush1.msra.mxu0 0.0
    %1775 = vmatprep.subr.mxu0 0.0
    %1776 = vmatpush1.msra.mxu0 0.0
    %1777 = vmatprep.subr.mxu0 0.0
    %1778 = vmatpush1.msra.mxu0 0.0
    %1779 = vmatprep.subr.mxu0 0.0
    %1780 = vmatpush1.msra.mxu0 %v1744
    %1781 = vmatprep.subr.mxu0 0.0
    %1782 = vmatpush1.msra.mxu0 %v1743
    %1783 = vmatprep.subr.mxu0 0.0
    %1784 = vmatpush2.msra.mxu0 0.0
    %1785 = vmatprep.subr.mxu0 0.0
    %1786 = vmatpush2.msra.mxu0 0.0
    %1787 = vmatprep.subr.mxu0 0.0
    %1788 = vmatpush2.msra.mxu0 0.0
    %1789 = vmatprep.subr.mxu0 0.0
    %1790 = vmatpush2.msra.mxu0 0.0
    %1791 = vmatprep.subr.mxu0 0.0
    %1792 = vmatpush2.msra.mxu0 0.0
    %1793 = vmatprep.subr.mxu0 0.0
    %1794 = vmatpush2.msra.mxu0 0.0
    %1795 = vmatprep.subr.mxu0 0.0
    %1796 = vmatpush2.msra.mxu0 0.0
    %1797 = vmatprep.subr.mxu0 0.0
    %1798 = vmatpush2.msra.mxu0 0.0
    %1799 = vmatprep.subr.mxu0 0.0
    %1800 = vmatpush2.msra.mxu0 0.0
    %1801 = vmatprep.subr.mxu0 0.0
    %1802 = vmatpush2.msra.mxu0 0.0
    %1803 = vmatprep.subr.mxu0 0.0
    %1804 = vmatpush2.msra.mxu0 0.0
    %1805 = vmatprep.subr.mxu0 0.0
    %1806 = vmatpush2.msra.mxu0 0.0
    %1807 = vmatprep.subr.mxu0 0.0
    %1808 = vmatpush2.msra.mxu0 0.0
    %1809 = vmatprep.subr.mxu0 0.0
    %1810 = vmatpush2.msra.mxu0 0.0
    %1811 = vmatprep.subr.mxu0 0.0
    %1812 = vmatpush2.msra.mxu0 0.0
    %1813 = vmatprep.subr.mxu0 0.0
    %1814 = vmatpush2.msra.mxu0 0.0
    %1815 = vmatprep.mubr.f32.mxu0 0.0
    %1816 = vmatmul.mubr.f32.gmra.mxu0 %v1746
    %v1817 = vpop.f32.mrf.mxu0
    %v1818 = vadd.f32 0.0, %v1817
    %v1819 = vpop.f32.mrf.mxu0
    %1820 = vmatprep.mubr.f32.mxu0 0.0
    %1821 = vmatmul.mubr.f32.gmra.mxu0 %v1749
    %v1822 = vpop.f32.mrf.mxu0
    %v1823 = vadd.f32 0.0, %v1822
    %v1824 = vpop.f32.mrf.mxu0
    %1825 = vdwg.mxu0
    %v1826 = vadd.f32 %v1738, %v1818
    %v1827 = vadd.f32 %v1739, %v1823
    %v1828 = vld [vmem:[%s232] sm:$0xff]
    %v1829 = vld [vmem:[%s232 + $0x8] sm:$0xff]
    %s1830 = scalar_lea.vmem [#allocation5], 224
    %v1831 = vld [vmem:[%s1830] sm:$0xff]
    %v1832 = vld [vmem:[%s1830 + $0x8] sm:$0xff]
    %v1834 = vsel %vm49, %v1828, 0
    %v1837 = vsel %vm49, %v1829, 0
    %1839 = vmatprep.subr.mxu0 0.0
    %1840 = vmatpush1.msra.mxu0 0.0
    %1841 = vmatprep.subr.mxu0 0.0
    %1842 = vmatpush1.msra.mxu0 0.0
    %1843 = vmatprep.subr.mxu0 0.0
    %1844 = vmatpush1.msra.mxu0 0.0
    %1845 = vmatprep.subr.mxu0 0.0
    %1846 = vmatpush1.msra.mxu0 0.0
    %1847 = vmatprep.subr.mxu0 0.0
    %1848 = vmatpush1.msra.mxu0 0.0
    %1849 = vmatprep.subr.mxu0 0.0
    %1850 = vmatpush1.msra.mxu0 0.0
    %1851 = vmatprep.subr.mxu0 0.0
    %1852 = vmatpush1.msra.mxu0 0.0
    %1853 = vmatprep.subr.mxu0 0.0
    %1854 = vmatpush1.msra.mxu0 0.0
    %1855 = vmatprep.subr.mxu0 0.0
    %1856 = vmatpush1.msra.mxu0 0.0
    %1857 = vmatprep.subr.mxu0 0.0
    %1858 = vmatpush1.msra.mxu0 0.0
    %1859 = vmatprep.subr.mxu0 0.0
    %1860 = vmatpush1.msra.mxu0 0.0
    %1861 = vmatprep.subr.mxu0 0.0
    %1862 = vmatpush1.msra.mxu0 0.0
    %1863 = vmatprep.subr.mxu0 0.0
    %1864 = vmatpush1.msra.mxu0 0.0
    %1865 = vmatprep.subr.mxu0 0.0
    %1866 = vmatpush1.msra.mxu0 0.0
    %1867 = vmatprep.subr.mxu0 0.0
    %1868 = vmatpush1.msra.mxu0 %v1832
    %1869 = vmatprep.subr.mxu0 0.0
    %1870 = vmatpush1.msra.mxu0 %v1831
    %1871 = vmatprep.subr.mxu0 0.0
    %1872 = vmatpush2.msra.mxu0 0.0
    %1873 = vmatprep.subr.mxu0 0.0
    %1874 = vmatpush2.msra.mxu0 0.0
    %1875 = vmatprep.subr.mxu0 0.0
    %1876 = vmatpush2.msra.mxu0 0.0
    %1877 = vmatprep.subr.mxu0 0.0
    %1878 = vmatpush2.msra.mxu0 0.0
    %1879 = vmatprep.subr.mxu0 0.0
    %1880 = vmatpush2.msra.mxu0 0.0
    %1881 = vmatprep.subr.mxu0 0.0
    %1882 = vmatpush2.msra.mxu0 0.0
    %1883 = vmatprep.subr.mxu0 0.0
    %1884 = vmatpush2.msra.mxu0 0.0
    %1885 = vmatprep.subr.mxu0 0.0
    %1886 = vmatpush2.msra.mxu0 0.0
    %1887 = vmatprep.subr.mxu0 0.0
    %1888 = vmatpush2.msra.mxu0 0.0
    %1889 = vmatprep.subr.mxu0 0.0
    %1890 = vmatpush2.msra.mxu0 0.0
    %1891 = vmatprep.subr.mxu0 0.0
    %1892 = vmatpush2.msra.mxu0 0.0
    %1893 = vmatprep.subr.mxu0 0.0
    %1894 = vmatpush2.msra.mxu0 0.0
    %1895 = vmatprep.subr.mxu0 0.0
    %1896 = vmatpush2.msra.mxu0 0.0
    %1897 = vmatprep.subr.mxu0 0.0
    %1898 = vmatpush2.msra.mxu0 0.0
    %1899 = vmatprep.subr.mxu0 0.0
    %1900 = vmatpush2.msra.mxu0 0.0
    %1901 = vmatprep.subr.mxu0 0.0
    %1902 = vmatpush2.msra.mxu0 0.0
    %1903 = vmatprep.mubr.f32.mxu0 0.0
    %1904 = vmatmul.mubr.f32.gmra.mxu0 %v1834
    %v1905 = vpop.f32.mrf.mxu0
    %v1906 = vadd.f32 0.0, %v1905
    %v1907 = vpop.f32.mrf.mxu0
    %1908 = vmatprep.mubr.f32.mxu0 0.0
    %1909 = vmatmul.mubr.f32.gmra.mxu0 %v1837
    %v1910 = vpop.f32.mrf.mxu0
    %v1911 = vadd.f32 0.0, %v1910
    %v1912 = vpop.f32.mrf.mxu0
    %1913 = vdwg.mxu0
    %v1914 = vadd.f32 %v1826, %v1906
    %v1915 = vadd.f32 %v1827, %v1911
    %s1916 = scalar_lea.vmem [#allocation7], 96
    %1917 = vst [vmem:[%s1916] sm:$0xff] %v1914
    %1918 = vst [vmem:[%s1916 + $0x8] sm:$0xff] %v1915
    %v1919 = vld [vmem:[#allocation2] sm:$0xff]
    %v1920 = vld [vmem:[#allocation2 + $0x8] sm:$0xff]
    %v1921 = vld [vmem:[%s1830] sm:$0xff]
    %v1922 = vld [vmem:[%s1830 + $0x8] sm:$0xff]
    %v1924 = vsel %vm49, %v1919, 0
    %v1927 = vsel %vm49, %v1920, 0
    %1929 = vmatprep.subr.mxu0 0.0
    %1930 = vmatpush1.msra.mxu0 0.0
    %1931 = vmatprep.subr.mxu0 0.0
    %1932 = vmatpush1.msra.mxu0 0.0
    %1933 = vmatprep.subr.mxu0 0.0
    %1934 = vmatpush1.msra.mxu0 0.0
    %1935 = vmatprep.subr.mxu0 0.0
    %1936 = vmatpush1.msra.mxu0 0.0
    %1937 = vmatprep.subr.mxu0 0.0
    %1938 = vmatpush1.msra.mxu0 0.0
    %1939 = vmatprep.subr.mxu0 0.0
    %1940 = vmatpush1.msra.mxu0 0.0
    %1941 = vmatprep.subr.mxu0 0.0
    %1942 = vmatpush1.msra.mxu0 0.0
    %1943 = vmatprep.subr.mxu0 0.0
    %1944 = vmatpush1.msra.mxu0 0.0
    %1945 = vmatprep.subr.mxu0 0.0
    %1946 = vmatpush1.msra.mxu0 0.0
    %1947 = vmatprep.subr.mxu0 0.0
    %1948 = vmatpush1.msra.mxu0 0.0
    %1949 = vmatprep.subr.mxu0 0.0
    %1950 = vmatpush1.msra.mxu0 0.0
    %1951 = vmatprep.subr.mxu0 0.0
    %1952 = vmatpush1.msra.mxu0 0.0
    %1953 = vmatprep.subr.mxu0 0.0
    %1954 = vmatpush1.msra.mxu0 0.0
    %1955 = vmatprep.subr.mxu0 0.0
    %1956 = vmatpush1.msra.mxu0 0.0
    %1957 = vmatprep.subr.mxu0 0.0
    %1958 = vmatpush1.msra.mxu0 %v1922
    %1959 = vmatprep.subr.mxu0 0.0
    %1960 = vmatpush1.msra.mxu0 %v1921
    %1961 = vmatprep.subr.mxu0 0.0
    %1962 = vmatpush2.msra.mxu0 0.0
    %1963 = vmatprep.subr.mxu0 0.0
    %1964 = vmatpush2.msra.mxu0 0.0
    %1965 = vmatprep.subr.mxu0 0.0
    %1966 = vmatpush2.msra.mxu0 0.0
    %1967 = vmatprep.subr.mxu0 0.0
    %1968 = vmatpush2.msra.mxu0 0.0
    %1969 = vmatprep.subr.mxu0 0.0
    %1970 = vmatpush2.msra.mxu0 0.0
    %1971 = vmatprep.subr.mxu0 0.0
    %1972 = vmatpush2.msra.mxu0 0.0
    %1973 = vmatprep.subr.mxu0 0.0
    %1974 = vmatpush2.msra.mxu0 0.0
    %1975 = vmatprep.subr.mxu0 0.0
    %1976 = vmatpush2.msra.mxu0 0.0
    %1977 = vmatprep.subr.mxu0 0.0
    %1978 = vmatpush2.msra.mxu0 0.0
    %1979 = vmatprep.subr.mxu0 0.0
    %1980 = vmatpush2.msra.mxu0 0.0
    %1981 = vmatprep.subr.mxu0 0.0
    %1982 = vmatpush2.msra.mxu0 0.0
    %1983 = vmatprep.subr.mxu0 0.0
    %1984 = vmatpush2.msra.mxu0 0.0
    %1985 = vmatprep.subr.mxu0 0.0
    %1986 = vmatpush2.msra.mxu0 0.0
    %1987 = vmatprep.subr.mxu0 0.0
    %1988 = vmatpush2.msra.mxu0 0.0
    %1989 = vmatprep.subr.mxu0 0.0
    %1990 = vmatpush2.msra.mxu0 0.0
    %1991 = vmatprep.subr.mxu0 0.0
    %1992 = vmatpush2.msra.mxu0 0.0
    %1993 = vmatprep.mubr.f32.mxu0 0.0
    %1994 = vmatmul.mubr.f32.gmra.mxu0 %v1924
    %v1995 = vpop.f32.mrf.mxu0
    %v1996 = vadd.f32 0.0, %v1995
    %v1997 = vpop.f32.mrf.mxu0
    %1998 = vmatprep.mubr.f32.mxu0 0.0
    %1999 = vmatmul.mubr.f32.gmra.mxu0 %v1927
    %v2000 = vpop.f32.mrf.mxu0
    %v2001 = vadd.f32 0.0, %v2000
    %v2002 = vpop.f32.mrf.mxu0
    %2003 = vdwg.mxu0
    %v2004 = vadd.f32 %v134, %v1996
    %v2005 = vadd.f32 %v139, %v2001
    %v2006 = vld [vmem:[%s143] sm:$0xff]
    %v2007 = vld [vmem:[%s143 + $0x8] sm:$0xff]
    %s2008 = scalar_lea.vmem [#allocation5], 240
    %v2009 = vld [vmem:[%s2008] sm:$0xff]
    %v2010 = vld [vmem:[%s2008 + $0x8] sm:$0xff]
    %v2012 = vsel %vm49, %v2006, 0
    %v2015 = vsel %vm49, %v2007, 0
    %2017 = vmatprep.subr.mxu0 0.0
    %2018 = vmatpush1.msra.mxu0 0.0
    %2019 = vmatprep.subr.mxu0 0.0
    %2020 = vmatpush1.msra.mxu0 0.0
    %2021 = vmatprep.subr.mxu0 0.0
    %2022 = vmatpush1.msra.mxu0 0.0
    %2023 = vmatprep.subr.mxu0 0.0
    %2024 = vmatpush1.msra.mxu0 0.0
    %2025 = vmatprep.subr.mxu0 0.0
    %2026 = vmatpush1.msra.mxu0 0.0
    %2027 = vmatprep.subr.mxu0 0.0
    %2028 = vmatpush1.msra.mxu0 0.0
    %2029 = vmatprep.subr.mxu0 0.0
    %2030 = vmatpush1.msra.mxu0 0.0
    %2031 = vmatprep.subr.mxu0 0.0
    %2032 = vmatpush1.msra.mxu0 0.0
    %2033 = vmatprep.subr.mxu0 0.0
    %2034 = vmatpush1.msra.mxu0 0.0
    %2035 = vmatprep.subr.mxu0 0.0
    %2036 = vmatpush1.msra.mxu0 0.0
    %2037 = vmatprep.subr.mxu0 0.0
    %2038 = vmatpush1.msra.mxu0 0.0
    %2039 = vmatprep.subr.mxu0 0.0
    %2040 = vmatpush1.msra.mxu0 0.0
    %2041 = vmatprep.subr.mxu0 0.0
    %2042 = vmatpush1.msra.mxu0 0.0
    %2043 = vmatprep.subr.mxu0 0.0
    %2044 = vmatpush1.msra.mxu0 0.0
    %2045 = vmatprep.subr.mxu0 0.0
    %2046 = vmatpush1.msra.mxu0 %v2010
    %2047 = vmatprep.subr.mxu0 0.0
    %2048 = vmatpush1.msra.mxu0 %v2009
    %2049 = vmatprep.subr.mxu0 0.0
    %2050 = vmatpush2.msra.mxu0 0.0
    %2051 = vmatprep.subr.mxu0 0.0
    %2052 = vmatpush2.msra.mxu0 0.0
    %2053 = vmatprep.subr.mxu0 0.0
    %2054 = vmatpush2.msra.mxu0 0.0
    %2055 = vmatprep.subr.mxu0 0.0
    %2056 = vmatpush2.msra.mxu0 0.0
    %2057 = vmatprep.subr.mxu0 0.0
    %2058 = vmatpush2.msra.mxu0 0.0
    %2059 = vmatprep.subr.mxu0 0.0
    %2060 = vmatpush2.msra.mxu0 0.0
    %2061 = vmatprep.subr.mxu0 0.0
    %2062 = vmatpush2.msra.mxu0 0.0
    %2063 = vmatprep.subr.mxu0 0.0
    %2064 = vmatpush2.msra.mxu0 0.0
    %2065 = vmatprep.subr.mxu0 0.0
    %2066 = vmatpush2.msra.mxu0 0.0
    %2067 = vmatprep.subr.mxu0 0.0
    %2068 = vmatpush2.msra.mxu0 0.0
    %2069 = vmatprep.subr.mxu0 0.0
    %2070 = vmatpush2.msra.mxu0 0.0
    %2071 = vmatprep.subr.mxu0 0.0
    %2072 = vmatpush2.msra.mxu0 0.0
    %2073 = vmatprep.subr.mxu0 0.0
    %2074 = vmatpush2.msra.mxu0 0.0
    %2075 = vmatprep.subr.mxu0 0.0
    %2076 = vmatpush2.msra.mxu0 0.0
    %2077 = vmatprep.subr.mxu0 0.0
    %2078 = vmatpush2.msra.mxu0 0.0
    %2079 = vmatprep.subr.mxu0 0.0
    %2080 = vmatpush2.msra.mxu0 0.0
    %2081 = vmatprep.mubr.f32.mxu0 0.0
    %2082 = vmatmul.mubr.f32.gmra.mxu0 %v2012
    %v2083 = vpop.f32.mrf.mxu0
    %v2084 = vadd.f32 0.0, %v2083
    %v2085 = vpop.f32.mrf.mxu0
    %2086 = vmatprep.mubr.f32.mxu0 0.0
    %2087 = vmatmul.mubr.f32.gmra.mxu0 %v2015
    %v2088 = vpop.f32.mrf.mxu0
    %v2089 = vadd.f32 0.0, %v2088
    %v2090 = vpop.f32.mrf.mxu0
    %2091 = vdwg.mxu0
    %v2092 = vadd.f32 %v2004, %v2084
    %v2093 = vadd.f32 %v2005, %v2089
    %v2094 = vld [vmem:[%s232] sm:$0xff]
    %v2095 = vld [vmem:[%s232 + $0x8] sm:$0xff]
    %s2096 = scalar_lea.vmem [#allocation5], 256
    %v2097 = vld [vmem:[%s2096] sm:$0xff]
    %v2098 = vld [vmem:[%s2096 + $0x8] sm:$0xff]
    %v2100 = vsel %vm49, %v2094, 0
    %v2103 = vsel %vm49, %v2095, 0
    %2105 = vmatprep.subr.mxu0 0.0
    %2106 = vmatpush1.msra.mxu0 0.0
    %2107 = vmatprep.subr.mxu0 0.0
    %2108 = vmatpush1.msra.mxu0 0.0
    %2109 = vmatprep.subr.mxu0 0.0
    %2110 = vmatpush1.msra.mxu0 0.0
    %2111 = vmatprep.subr.mxu0 0.0
    %2112 = vmatpush1.msra.mxu0 0.0
    %2113 = vmatprep.subr.mxu0 0.0
    %2114 = vmatpush1.msra.mxu0 0.0
    %2115 = vmatprep.subr.mxu0 0.0
    %2116 = vmatpush1.msra.mxu0 0.0
    %2117 = vmatprep.subr.mxu0 0.0
    %2118 = vmatpush1.msra.mxu0 0.0
    %2119 = vmatprep.subr.mxu0 0.0
    %2120 = vmatpush1.msra.mxu0 0.0
    %2121 = vmatprep.subr.mxu0 0.0
    %2122 = vmatpush1.msra.mxu0 0.0
    %2123 = vmatprep.subr.mxu0 0.0
    %2124 = vmatpush1.msra.mxu0 0.0
    %2125 = vmatprep.subr.mxu0 0.0
    %2126 = vmatpush1.msra.mxu0 0.0
    %2127 = vmatprep.subr.mxu0 0.0
    %2128 = vmatpush1.msra.mxu0 0.0
    %2129 = vmatprep.subr.mxu0 0.0
    %2130 = vmatpush1.msra.mxu0 0.0
    %2131 = vmatprep.subr.mxu0 0.0
    %2132 = vmatpush1.msra.mxu0 0.0
    %2133 = vmatprep.subr.mxu0 0.0
    %2134 = vmatpush1.msra.mxu0 %v2098
    %2135 = vmatprep.subr.mxu0 0.0
    %2136 = vmatpush1.msra.mxu0 %v2097
    %2137 = vmatprep.subr.mxu0 0.0
    %2138 = vmatpush2.msra.mxu0 0.0
    %2139 = vmatprep.subr.mxu0 0.0
    %2140 = vmatpush2.msra.mxu0 0.0
    %2141 = vmatprep.subr.mxu0 0.0
    %2142 = vmatpush2.msra.mxu0 0.0
    %2143 = vmatprep.subr.mxu0 0.0
    %2144 = vmatpush2.msra.mxu0 0.0
    %2145 = vmatprep.subr.mxu0 0.0
    %2146 = vmatpush2.msra.mxu0 0.0
    %2147 = vmatprep.subr.mxu0 0.0
    %2148 = vmatpush2.msra.mxu0 0.0
    %2149 = vmatprep.subr.mxu0 0.0
    %2150 = vmatpush2.msra.mxu0 0.0
    %2151 = vmatprep.subr.mxu0 0.0
    %2152 = vmatpush2.msra.mxu0 0.0
    %2153 = vmatprep.subr.mxu0 0.0
    %2154 = vmatpush2.msra.mxu0 0.0
    %2155 = vmatprep.subr.mxu0 0.0
    %2156 = vmatpush2.msra.mxu0 0.0
    %2157 = vmatprep.subr.mxu0 0.0
    %2158 = vmatpush2.msra.mxu0 0.0
    %2159 = vmatprep.subr.mxu0 0.0
    %2160 = vmatpush2.msra.mxu0 0.0
    %2161 = vmatprep.subr.mxu0 0.0
    %2162 = vmatpush2.msra.mxu0 0.0
    %2163 = vmatprep.subr.mxu0 0.0
    %2164 = vmatpush2.msra.mxu0 0.0
    %2165 = vmatprep.subr.mxu0 0.0
    %2166 = vmatpush2.msra.mxu0 0.0
    %2167 = vmatprep.subr.mxu0 0.0
    %2168 = vmatpush2.msra.mxu0 0.0
    %2169 = vmatprep.mubr.f32.mxu0 0.0
    %2170 = vmatmul.mubr.f32.gmra.mxu0 %v2100
    %v2171 = vpop.f32.mrf.mxu0
    %v2172 = vadd.f32 0.0, %v2171
    %v2173 = vpop.f32.mrf.mxu0
    %2174 = vmatprep.mubr.f32.mxu0 0.0
    %2175 = vmatmul.mubr.f32.gmra.mxu0 %v2103
    %v2176 = vpop.f32.mrf.mxu0
    %v2177 = vadd.f32 0.0, %v2176
    %v2178 = vpop.f32.mrf.mxu0
    %2179 = vdwg.mxu0
    %v2180 = vadd.f32 %v2092, %v2172
    %v2181 = vadd.f32 %v2093, %v2177
    %s2182 = scalar_lea.vmem [#allocation7], 112
    %2183 = vst [vmem:[%s2182] sm:$0xff] %v2180
    %2184 = vst [vmem:[%s2182 + $0x8] sm:$0xff] %v2181
    // Predicated region
    $region22: #{tpu_custom_call.1} parent=1 // pred_check
      _
    $region23: #{tpu_custom_call.1} parent=1 // pred_check_branch
      %2186 = sbr.rel (0) target = $region25
    $region24: #{tpu_custom_call.1} parent=1 // pred_region
      %s2188 = ssub.s32 2048, 2048
      %2189 = vsyncadd [#allocation4], %s2188
      %s2190 = sshll.u32 [#allocation7], 4
      %s2191 = int_to_ptr.vmem [resolvable:$true] %s2190
      %2196 = dma.vmem_to_hbm [thread:$0]  %s2191, 2048, %s3, [#allocation4], 128, 128, 8
    $region25: #{tpu_custom_call.1} parent=1 // pred_fallthru
      _
    // Predicated region
    $region26: #{tpu_custom_call.1} parent=1 // pred_check
      _
    $region27: #{tpu_custom_call.1} parent=1 // pred_check_branch
      %2198 = sbr.rel (0) target = $region29
    $region28: #{tpu_custom_call.1} parent=1 // pred_region
      %2199 = dma.done [#allocation4], 2048
    $region29: #{tpu_custom_call.1} parent=1 // pred_fallthru
      _
    %2200 = vsyncpa [#allocation3], 1
    %2201 = vsyncpa [#allocation6], 1
    %2202 = vsyncpa [#allocation4], 1

</llo_original>
